<compile_context>
chip_gen: v6e
topology: v6e:2x2x1
jax: 0.10.0
libtpu: 0.0.40
codegen_flags: <defaults>
</compile_context>

<pallas_src>
import math

import numpy as np
import jax
import jax.numpy as jnp
from jax import lax
from jax.experimental import pallas as pl
from jax.experimental.pallas import tpu as pltpu


# --------------------------------------------------------------------------
# Kernel: one grid step = (block of bp planes) x (one H_out tile).
# --------------------------------------------------------------------------
def _upsample_kernel(x_ref, rh_ref, rwt_ref, o_ref):
    """x_ref:   (bp, H_in, W_in)      block of flattened (n, c) planes
    rh_ref:  (tho, H_in)           tile of the row-interpolation matrix
    rwt_ref: (W_in, W_out_pad)     column-interpolation matrix (transposed)
    o_ref:   (bp, tho, W_out_pad)  output tile
    """
    bp = x_ref.shape[0]

    def body(b, carry):
        # Per-plane 2-D dots keep only one (tho, w) + (tho, wo) result live
        # (review item 1) and feed the MXU with lane-dense operands.
        xb = x_ref[b].astype(rh_ref.dtype)                       # (h, w)
        tmp = jnp.dot(rh_ref[...], xb,
                      preferred_element_type=jnp.float32)        # (tho, w) f32
        out = jnp.dot(tmp.astype(rwt_ref.dtype), rwt_ref[...],
                      preferred_element_type=jnp.float32)        # (tho, wo)
        o_ref[b] = out.astype(o_ref.dtype)
        return carry

    # Short plane loops are unrolled for scheduler visibility; long ones stay
    # rolled (two big matmuls per iteration hide the loop overhead anyway).
    lax.fori_loop(0, bp, body, 0, unroll=(bp <= 8))


# --------------------------------------------------------------------------
# Host-side helpers.
# --------------------------------------------------------------------------
def _interp_matrix(in_size, out_size, mode):
    """(out_size, in_size) interpolation matrix matching torch semantics."""
    if mode == "nearest":
        # PyTorch 'nearest': src = floor(dst * in / out).
        src = np.floor(np.arange(out_size) * (in_size / out_size)).astype(np.int64)
        src = np.clip(src, 0, in_size - 1)
        m = np.zeros((out_size, in_size), dtype=np.float32)
        m[np.arange(out_size), src] = 1.0
    elif mode == "bilinear":
        # align_corners=False (PyTorch default for F.interpolate).
        pos = (np.arange(out_size) + 0.5) * (in_size / out_size) - 0.5
        pos = np.clip(pos, 0.0, in_size - 1)
        lo = np.floor(pos).astype(np.int64)
        hi = np.minimum(lo + 1, in_size - 1)
        frac = (pos - lo).astype(np.float32)
        m = np.zeros((out_size, in_size), dtype=np.float32)
        np.add.at(m, (np.arange(out_size), lo), 1.0 - frac)
        np.add.at(m, (np.arange(out_size), hi), frac)
    else:
        raise NotImplementedError(f"mode={mode}")
    return m


def _vmem_capacity_bytes():
    """Physical VMEM per TensorCore; conservative (v7x) fallback."""
    try:
        info = pltpu.get_tpu_info()
        for attr in ("vmem_capacity_bytes", "vmem_size_bytes", "vmem_bytes"):
            cap = getattr(info, attr, None)
            if cap:
                return int(cap)
    except Exception:
        pass
    return 64 * 1024 * 1024


def _tile_candidates(ho, max_tho):
    """H_out tile sizes: multiples of 8 that evenly divide ho (or ho itself)."""
    if ho <= max_tho:
        cands = [ho]
    else:
        best = None
        for t in range(max_tho, 7, -1):
            if ho % t == 0 and t % 8 == 0:
                best = t
                break
        cands = [best] if best is not None else [ho]   # correctness fallback
    for t in (512, 256, 128, 64, 32, 16, 8):
        if t < cands[0] and ho % t == 0:
            cands.append(t)
    return cands


def _choose_blocks(nplanes, h, w, ho, wo_pad, in_isz, out_isz, comp_isz,
                   budget, max_tho):
    """Pick (planes per step bp, H_out tile tho) so the double-buffered
    pipelined blocks plus in-kernel temporaries fit the VMEM budget."""
    cands = _tile_candidates(ho, max_tho)
    for tho in cands:
        for bp in (64, 48, 32, 24, 16, 8, 4, 2, 1):
            if bp > nplanes:
                continue
            blocks = (bp * h * w * in_isz             # x plane block
                      + tho * h * comp_isz            # R_h tile
                      + w * wo_pad * comp_isz         # R_w^T
                      + bp * tho * wo_pad * out_isz)  # output tile
            temps = (h * w * comp_isz                 # per-plane cast of x[b]
                     + tho * w * (4 + comp_isz)       # H-step acc (+ cast)
                     + tho * wo_pad * (4 + out_isz))  # W-step acc + store cast
            if 2 * blocks + temps + (2 << 20) <= budget:
                return bp, tho
    return 1, cands[-1]


# --------------------------------------------------------------------------
# Public entry point: F.interpolate(x, scale_factor, mode) for NCHW input.
# --------------------------------------------------------------------------
def upsample(x, scale_factor, mode="nearest"):
    n, c, h, w = x.shape
    if isinstance(scale_factor, (tuple, list)):
        sh, sw = scale_factor
    else:
        sh = sw = scale_factor
    ho = int(math.floor(h * sh))
    wo = int(math.floor(w * sw))

    # bf16 inputs run the MXU in bf16 (exact for 'nearest' since the weights
    # are 0/1 and accumulation is f32); everything else stays f32.
    compute_dtype = jnp.bfloat16 if x.dtype == jnp.bfloat16 else jnp.float32
    comp_isz = 2 if compute_dtype == jnp.bfloat16 else 4

    rh_np = _interp_matrix(h, ho, mode)          # (ho, h)
    rwt_np = _interp_matrix(w, wo, mode).T       # (w, wo)

    # Lane-dense output: pad W_out to 128 with zero weight columns when it is
    # lane-sparse, slice the padding off on the host.
    wo_pad = wo if wo >= 128 else 128
    if wo_pad != wo:
        rwt_np = np.pad(rwt_np, ((0, 0), (0, wo_pad - wo)))

    rh = jnp.asarray(rh_np, dtype=compute_dtype)
    rwt = jnp.asarray(rwt_np, dtype=compute_dtype)

    nplanes = n * c
    xf = x.reshape(nplanes, h, w)

    # Per-generation VMEM budgeting.
    cap = _vmem_capacity_bytes()
    if cap >= 128 * 1024 * 1024:                 # v5e / v6e (128 MiB VMEM)
        budget, vmem_limit, max_tho = 64 << 20, 96 << 20, 1024
    else:                                        # v7x (64 MiB/TC) or unknown
        budget, vmem_limit, max_tho = 28 << 20, 44 << 20, 512

    in_isz = np.dtype(x.dtype).itemsize
    bp, tho = _choose_blocks(nplanes, h, w, ho, wo_pad,
                             in_isz, in_isz, comp_isz, budget, max_tho)
    grid = (pl.cdiv(nplanes, bp), ho // tho)

    out = pl.pallas_call(
        _upsample_kernel,
        out_shape=jax.ShapeDtypeStruct((nplanes, ho, wo_pad), x.dtype),
        grid_spec=pltpu.PrefetchScalarGridSpec(
            num_scalar_prefetch=0,
            grid=grid,
            in_specs=[
                # Block of bp planes; constant across the H_out-tile axis
                # (inner axis), so it is not re-DMA'd per tile.
                pl.BlockSpec((bp, h, w), lambda i, t: (i, 0, 0)),
                # H_out tile of the row-interpolation matrix.
                pl.BlockSpec((tho, h), lambda i, t: (t, 0)),
                # Column-interpolation matrix (resident).
                pl.BlockSpec((w, wo_pad), lambda i, t: (0, 0)),
            ],
            out_specs=pl.BlockSpec((bp, tho, wo_pad), lambda i, t: (i, t, 0)),
        ),
        compiler_params=pltpu.CompilerParams(
            # No cross-step dependency remains (no scratch accumulator), so
            # both axes can shard across cores.
            dimension_semantics=("parallel", "parallel"),
            vmem_limit_bytes=vmem_limit,
        ),
    )(xf, rh, rwt)

    if wo_pad != wo:
        out = out[:, :, :wo]
    return out.reshape(n, c, ho, wo)


if __name__ == "__main__":
    key = jax.random.PRNGKey(0)
    # Small NCHW input: batch=2, channels=4, spatial=16x16.
    x = jax.random.normal(key, (2, 4, 16, 16), dtype=jnp.float32)
    x_np = np.asarray(x)
    s = 2

    # SalGAN360 uses Upsample(scale_factor=2, mode='nearest').
    y = jax.block_until_ready(upsample(x, s, mode="nearest"))
    ref = np.repeat(np.repeat(x_np, s, axis=2), s, axis=3)
    assert y.shape == ref.shape, (y.shape, ref.shape)
    np.testing.assert_allclose(np.asarray(y), ref, rtol=1e-6, atol=1e-6)

    # Also exercise the generic (bilinear) path of the same kernel.
    yb = jax.block_until_ready(upsample(x, s, mode="bilinear"))
    rh_np = _interp_matrix(16, 32, "bilinear")
    rw_np = _interp_matrix(16, 32, "bilinear")
    ref_b = np.einsum("oh,nchw,vw->ncov",
                      rh_np.astype(np.float64),
                      x_np.astype(np.float64),
                      rw_np.astype(np.float64))
    np.testing.assert_allclose(np.asarray(yb), ref_b, rtol=1e-4, atol=1e-4)

    print("KERNEL_OK")
</pallas_src>

<mosaic_0001>
module attributes {stable_mosaic.version = 11 : i64} {
  func.func @_upsample_kernel(%arg0: i32, %arg1: i32, %arg2: memref<8x16x16xf32, #tpu.memory_space<vmem>>, %arg3: memref<32x16xf32, #tpu.memory_space<vmem>>, %arg4: memref<16x128xf32, #tpu.memory_space<vmem>>, %arg5: memref<8x32x128xf32, #tpu.memory_space<vmem>>) attributes {dimension_semantics = [#tpu.dimension_semantics<parallel>, #tpu.dimension_semantics<parallel>], iteration_bounds = array<i64: 1, 1>, scalar_prefetch = 0 : i64, scratch_operands = 0 : i64, tpu.core_type = #tpu.core_type<tc>, window_params = [{transform_indices = @transform_0, window_bounds = array<i64: 8, 16, 16>}, {transform_indices = @transform_1, window_bounds = array<i64: 32, 16>}, {pipeline_mode = #tpu.pipeline_mode<synchronous>, transform_indices = @transform_2, window_bounds = array<i64: 16, 128>}, {transform_indices = @transform_3, window_bounds = array<i64: 8, 32, 128>}]} {
    %c0_i32 = arith.constant 0 : i32
    %0 = arith.index_cast %c0_i32 : i32 to index
    %c0 = arith.constant 0 : index
    %c0_0 = arith.constant 0 : index
    %1 = vector.load %arg2[%0, %c0, %c0_0] : memref<8x16x16xf32, #tpu.memory_space<vmem>>, vector<1x16x16xf32>
    %2 = vector.shape_cast %1 : vector<1x16x16xf32> to vector<16x16xf32>
    %c0_1 = arith.constant 0 : index
    %c0_2 = arith.constant 0 : index
    %3 = vector.load %arg3[%c0_1, %c0_2] : memref<32x16xf32, #tpu.memory_space<vmem>>, vector<32x16xf32>
    %cst = arith.constant dense<0.000000e+00> : vector<32x16xf32>
    %4 = tpu.matmul %3, %2, %cst {dimension_numbers = #tpu.dot_dimension_numbers<[1], [0], [0], [1], [0, 0, 1, 1], [], []>} : vector<32x16xf32>, vector<16x16xf32>, vector<32x16xf32> -> vector<32x16xf32>
    %c0_3 = arith.constant 0 : index
    %c0_4 = arith.constant 0 : index
    %5 = vector.load %arg4[%c0_3, %c0_4] : memref<16x128xf32, #tpu.memory_space<vmem>>, vector<16x128xf32>
    %cst_5 = arith.constant dense<0.000000e+00> : vector<32x128xf32>
    %6 = tpu.matmul %4, %5, %cst_5 {dimension_numbers = #tpu.dot_dimension_numbers<[1], [0], [0], [1], [0, 0, 1, 1], [], []>} : vector<32x16xf32>, vector<16x128xf32>, vector<32x128xf32> -> vector<32x128xf32>
    %7 = arith.index_cast %c0_i32 : i32 to index
    %c0_6 = arith.constant 0 : index
    %c0_7 = arith.constant 0 : index
    %8 = vector.load %arg5[%7, %c0_6, %c0_7] : memref<8x32x128xf32, #tpu.memory_space<vmem>>, vector<1x32x128xf32>
    %9 = vector.shape_cast %8 : vector<1x32x128xf32> to vector<32x128xf32>
    %10 = vector.shape_cast %6 : vector<32x128xf32> to vector<1x32x128xf32>
    tpu.vector_store %arg5[%7, %c0_6, %c0_7], %10 {strides = array<i32>} : memref<8x32x128xf32, #tpu.memory_space<vmem>>, vector<1x32x128xf32>,
    %c1_i32 = arith.constant 1 : i32
    %11 = arith.index_cast %c1_i32 : i32 to index
    %c0_8 = arith.constant 0 : index
    %c0_9 = arith.constant 0 : index
    %12 = vector.load %arg2[%11, %c0_8, %c0_9] : memref<8x16x16xf32, #tpu.memory_space<vmem>>, vector<1x16x16xf32>
    %13 = vector.shape_cast %12 : vector<1x16x16xf32> to vector<16x16xf32>
    %c0_10 = arith.constant 0 : index
    %c0_11 = arith.constant 0 : index
    %14 = vector.load %arg3[%c0_10, %c0_11] : memref<32x16xf32, #tpu.memory_space<vmem>>, vector<32x16xf32>
    %cst_12 = arith.constant dense<0.000000e+00> : vector<32x16xf32>
    %15 = tpu.matmul %14, %13, %cst_12 {dimension_numbers = #tpu.dot_dimension_numbers<[1], [0], [0], [1], [0, 0, 1, 1], [], []>} : vector<32x16xf32>, vector<16x16xf32>, vector<32x16xf32> -> vector<32x16xf32>
    %c0_13 = arith.constant 0 : index
    %c0_14 = arith.constant 0 : index
    %16 = vector.load %arg4[%c0_13, %c0_14] : memref<16x128xf32, #tpu.memory_space<vmem>>, vector<16x128xf32>
    %cst_15 = arith.constant dense<0.000000e+00> : vector<32x128xf32>
    %17 = tpu.matmul %15, %16, %cst_15 {dimension_numbers = #tpu.dot_dimension_numbers<[1], [0], [0], [1], [0, 0, 1, 1], [], []>} : vector<32x16xf32>, vector<16x128xf32>, vector<32x128xf32> -> vector<32x128xf32>
    %18 = arith.index_cast %c1_i32 : i32 to index
    %c0_16 = arith.constant 0 : index
    %c0_17 = arith.constant 0 : index
    %19 = vector.load %arg5[%18, %c0_16, %c0_17] : memref<8x32x128xf32, #tpu.memory_space<vmem>>, vector<1x32x128xf32>
    %20 = vector.shape_cast %19 : vector<1x32x128xf32> to vector<32x128xf32>
    %21 = vector.shape_cast %17 : vector<32x128xf32> to vector<1x32x128xf32>
    tpu.vector_store %arg5[%18, %c0_16, %c0_17], %21 {strides = array<i32>} : memref<8x32x128xf32, #tpu.memory_space<vmem>>, vector<1x32x128xf32>,
    %c2_i32 = arith.constant 2 : i32
    %22 = arith.index_cast %c2_i32 : i32 to index
    %c0_18 = arith.constant 0 : index
    %c0_19 = arith.constant 0 : index
    %23 = vector.load %arg2[%22, %c0_18, %c0_19] : memref<8x16x16xf32, #tpu.memory_space<vmem>>, vector<1x16x16xf32>
    %24 = vector.shape_cast %23 : vector<1x16x16xf32> to vector<16x16xf32>
    %c0_20 = arith.constant 0 : index
    %c0_21 = arith.constant 0 : index
    %25 = vector.load %arg3[%c0_20, %c0_21] : memref<32x16xf32, #tpu.memory_space<vmem>>, vector<32x16xf32>
    %cst_22 = arith.constant dense<0.000000e+00> : vector<32x16xf32>
    %26 = tpu.matmul %25, %24, %cst_22 {dimension_numbers = #tpu.dot_dimension_numbers<[1], [0], [0], [1], [0, 0, 1, 1], [], []>} : vector<32x16xf32>, vector<16x16xf32>, vector<32x16xf32> -> vector<32x16xf32>
    %c0_23 = arith.constant 0 : index
    %c0_24 = arith.constant 0 : index
    %27 = vector.load %arg4[%c0_23, %c0_24] : memref<16x128xf32, #tpu.memory_space<vmem>>, vector<16x128xf32>
    %cst_25 = arith.constant dense<0.000000e+00> : vector<32x128xf32>
    %28 = tpu.matmul %26, %27, %cst_25 {dimension_numbers = #tpu.dot_dimension_numbers<[1], [0], [0], [1], [0, 0, 1, 1], [], []>} : vector<32x16xf32>, vector<16x128xf32>, vector<32x128xf32> -> vector<32x128xf32>
    %29 = arith.index_cast %c2_i32 : i32 to index
    %c0_26 = arith.constant 0 : index
    %c0_27 = arith.constant 0 : index
    %30 = vector.load %arg5[%29, %c0_26, %c0_27] : memref<8x32x128xf32, #tpu.memory_space<vmem>>, vector<1x32x128xf32>
    %31 = vector.shape_cast %30 : vector<1x32x128xf32> to vector<32x128xf32>
    %32 = vector.shape_cast %28 : vector<32x128xf32> to vector<1x32x128xf32>
    tpu.vector_store %arg5[%29, %c0_26, %c0_27], %32 {strides = array<i32>} : memref<8x32x128xf32, #tpu.memory_space<vmem>>, vector<1x32x128xf32>,
    %c3_i32 = arith.constant 3 : i32
    %33 = arith.index_cast %c3_i32 : i32 to index
    %c0_28 = arith.constant 0 : index
    %c0_29 = arith.constant 0 : index
    %34 = vector.load %arg2[%33, %c0_28, %c0_29] : memref<8x16x16xf32, #tpu.memory_space<vmem>>, vector<1x16x16xf32>
    %35 = vector.shape_cast %34 : vector<1x16x16xf32> to vector<16x16xf32>
    %c0_30 = arith.constant 0 : index
    %c0_31 = arith.constant 0 : index
    %36 = vector.load %arg3[%c0_30, %c0_31] : memref<32x16xf32, #tpu.memory_space<vmem>>, vector<32x16xf32>
    %cst_32 = arith.constant dense<0.000000e+00> : vector<32x16xf32>
    %37 = tpu.matmul %36, %35, %cst_32 {dimension_numbers = #tpu.dot_dimension_numbers<[1], [0], [0], [1], [0, 0, 1, 1], [], []>} : vector<32x16xf32>, vector<16x16xf32>, vector<32x16xf32> -> vector<32x16xf32>
    %c0_33 = arith.constant 0 : index
    %c0_34 = arith.constant 0 : index
    %38 = vector.load %arg4[%c0_33, %c0_34] : memref<16x128xf32, #tpu.memory_space<vmem>>, vector<16x128xf32>
    %cst_35 = arith.constant dense<0.000000e+00> : vector<32x128xf32>
    %39 = tpu.matmul %37, %38, %cst_35 {dimension_numbers = #tpu.dot_dimension_numbers<[1], [0], [0], [1], [0, 0, 1, 1], [], []>} : vector<32x16xf32>, vector<16x128xf32>, vector<32x128xf32> -> vector<32x128xf32>
    %40 = arith.index_cast %c3_i32 : i32 to index
    %c0_36 = arith.constant 0 : index
    %c0_37 = arith.constant 0 : index
    %41 = vector.load %arg5[%40, %c0_36, %c0_37] : memref<8x32x128xf32, #tpu.memory_space<vmem>>, vector<1x32x128xf32>
    %42 = vector.shape_cast %41 : vector<1x32x128xf32> to vector<32x128xf32>
    %43 = vector.shape_cast %39 : vector<32x128xf32> to vector<1x32x128xf32>
    tpu.vector_store %arg5[%40, %c0_36, %c0_37], %43 {strides = array<i32>} : memref<8x32x128xf32, #tpu.memory_space<vmem>>, vector<1x32x128xf32>,
    %c4_i32 = arith.constant 4 : i32
    %44 = arith.index_cast %c4_i32 : i32 to index
    %c0_38 = arith.constant 0 : index
    %c0_39 = arith.constant 0 : index
    %45 = vector.load %arg2[%44, %c0_38, %c0_39] : memref<8x16x16xf32, #tpu.memory_space<vmem>>, vector<1x16x16xf32>
    %46 = vector.shape_cast %45 : vector<1x16x16xf32> to vector<16x16xf32>
    %c0_40 = arith.constant 0 : index
    %c0_41 = arith.constant 0 : index
    %47 = vector.load %arg3[%c0_40, %c0_41] : memref<32x16xf32, #tpu.memory_space<vmem>>, vector<32x16xf32>
    %cst_42 = arith.constant dense<0.000000e+00> : vector<32x16xf32>
    %48 = tpu.matmul %47, %46, %cst_42 {dimension_numbers = #tpu.dot_dimension_numbers<[1], [0], [0], [1], [0, 0, 1, 1], [], []>} : vector<32x16xf32>, vector<16x16xf32>, vector<32x16xf32> -> vector<32x16xf32>
    %c0_43 = arith.constant 0 : index
    %c0_44 = arith.constant 0 : index
    %49 = vector.load %arg4[%c0_43, %c0_44] : memref<16x128xf32, #tpu.memory_space<vmem>>, vector<16x128xf32>
    %cst_45 = arith.constant dense<0.000000e+00> : vector<32x128xf32>
    %50 = tpu.matmul %48, %49, %cst_45 {dimension_numbers = #tpu.dot_dimension_numbers<[1], [0], [0], [1], [0, 0, 1, 1], [], []>} : vector<32x16xf32>, vector<16x128xf32>, vector<32x128xf32> -> vector<32x128xf32>
    %51 = arith.index_cast %c4_i32 : i32 to index
    %c0_46 = arith.constant 0 : index
    %c0_47 = arith.constant 0 : index
    %52 = vector.load %arg5[%51, %c0_46, %c0_47] : memref<8x32x128xf32, #tpu.memory_space<vmem>>, vector<1x32x128xf32>
    %53 = vector.shape_cast %52 : vector<1x32x128xf32> to vector<32x128xf32>
    %54 = vector.shape_cast %50 : vector<32x128xf32> to vector<1x32x128xf32>
    tpu.vector_store %arg5[%51, %c0_46, %c0_47], %54 {strides = array<i32>} : memref<8x32x128xf32, #tpu.memory_space<vmem>>, vector<1x32x128xf32>,
    %c5_i32 = arith.constant 5 : i32
    %55 = arith.index_cast %c5_i32 : i32 to index
    %c0_48 = arith.constant 0 : index
    %c0_49 = arith.constant 0 : index
    %56 = vector.load %arg2[%55, %c0_48, %c0_49] : memref<8x16x16xf32, #tpu.memory_space<vmem>>, vector<1x16x16xf32>
    %57 = vector.shape_cast %56 : vector<1x16x16xf32> to vector<16x16xf32>
    %c0_50 = arith.constant 0 : index
    %c0_51 = arith.constant 0 : index
    %58 = vector.load %arg3[%c0_50, %c0_51] : memref<32x16xf32, #tpu.memory_space<vmem>>, vector<32x16xf32>
    %cst_52 = arith.constant dense<0.000000e+00> : vector<32x16xf32>
    %59 = tpu.matmul %58, %57, %cst_52 {dimension_numbers = #tpu.dot_dimension_numbers<[1], [0], [0], [1], [0, 0, 1, 1], [], []>} : vector<32x16xf32>, vector<16x16xf32>, vector<32x16xf32> -> vector<32x16xf32>
    %c0_53 = arith.constant 0 : index
    %c0_54 = arith.constant 0 : index
    %60 = vector.load %arg4[%c0_53, %c0_54] : memref<16x128xf32, #tpu.memory_space<vmem>>, vector<16x128xf32>
    %cst_55 = arith.constant dense<0.000000e+00> : vector<32x128xf32>
    %61 = tpu.matmul %59, %60, %cst_55 {dimension_numbers = #tpu.dot_dimension_numbers<[1], [0], [0], [1], [0, 0, 1, 1], [], []>} : vector<32x16xf32>, vector<16x128xf32>, vector<32x128xf32> -> vector<32x128xf32>
    %62 = arith.index_cast %c5_i32 : i32 to index
    %c0_56 = arith.constant 0 : index
    %c0_57 = arith.constant 0 : index
    %63 = vector.load %arg5[%62, %c0_56, %c0_57] : memref<8x32x128xf32, #tpu.memory_space<vmem>>, vector<1x32x128xf32>
    %64 = vector.shape_cast %63 : vector<1x32x128xf32> to vector<32x128xf32>
    %65 = vector.shape_cast %61 : vector<32x128xf32> to vector<1x32x128xf32>
    tpu.vector_store %arg5[%62, %c0_56, %c0_57], %65 {strides = array<i32>} : memref<8x32x128xf32, #tpu.memory_space<vmem>>, vector<1x32x128xf32>,
    %c6_i32 = arith.constant 6 : i32
    %66 = arith.index_cast %c6_i32 : i32 to index
    %c0_58 = arith.constant 0 : index
    %c0_59 = arith.constant 0 : index
    %67 = vector.load %arg2[%66, %c0_58, %c0_59] : memref<8x16x16xf32, #tpu.memory_space<vmem>>, vector<1x16x16xf32>
    %68 = vector.shape_cast %67 : vector<1x16x16xf32> to vector<16x16xf32>
    %c0_60 = arith.constant 0 : index
    %c0_61 = arith.constant 0 : index
    %69 = vector.load %arg3[%c0_60, %c0_61] : memref<32x16xf32, #tpu.memory_space<vmem>>, vector<32x16xf32>
    %cst_62 = arith.constant dense<0.000000e+00> : vector<32x16xf32>
    %70 = tpu.matmul %69, %68, %cst_62 {dimension_numbers = #tpu.dot_dimension_numbers<[1], [0], [0], [1], [0, 0, 1, 1], [], []>} : vector<32x16xf32>, vector<16x16xf32>, vector<32x16xf32> -> vector<32x16xf32>
    %c0_63 = arith.constant 0 : index
    %c0_64 = arith.constant 0 : index
    %71 = vector.load %arg4[%c0_63, %c0_64] : memref<16x128xf32, #tpu.memory_space<vmem>>, vector<16x128xf32>
    %cst_65 = arith.constant dense<0.000000e+00> : vector<32x128xf32>
    %72 = tpu.matmul %70, %71, %cst_65 {dimension_numbers = #tpu.dot_dimension_numbers<[1], [0], [0], [1], [0, 0, 1, 1], [], []>} : vector<32x16xf32>, vector<16x128xf32>, vector<32x128xf32> -> vector<32x128xf32>
    %73 = arith.index_cast %c6_i32 : i32 to index
    %c0_66 = arith.constant 0 : index
    %c0_67 = arith.constant 0 : index
    %74 = vector.load %arg5[%73, %c0_66, %c0_67] : memref<8x32x128xf32, #tpu.memory_space<vmem>>, vector<1x32x128xf32>
    %75 = vector.shape_cast %74 : vector<1x32x128xf32> to vector<32x128xf32>
    %76 = vector.shape_cast %72 : vector<32x128xf32> to vector<1x32x128xf32>
    tpu.vector_store %arg5[%73, %c0_66, %c0_67], %76 {strides = array<i32>} : memref<8x32x128xf32, #tpu.memory_space<vmem>>, vector<1x32x128xf32>,
    %c7_i32 = arith.constant 7 : i32
    %77 = arith.index_cast %c7_i32 : i32 to index
    %c0_68 = arith.constant 0 : index
    %c0_69 = arith.constant 0 : index
    %78 = vector.load %arg2[%77, %c0_68, %c0_69] : memref<8x16x16xf32, #tpu.memory_space<vmem>>, vector<1x16x16xf32>
    %79 = vector.shape_cast %78 : vector<1x16x16xf32> to vector<16x16xf32>
    %c0_70 = arith.constant 0 : index
    %c0_71 = arith.constant 0 : index
    %80 = vector.load %arg3[%c0_70, %c0_71] : memref<32x16xf32, #tpu.memory_space<vmem>>, vector<32x16xf32>
    %cst_72 = arith.constant dense<0.000000e+00> : vector<32x16xf32>
    %81 = tpu.matmul %80, %79, %cst_72 {dimension_numbers = #tpu.dot_dimension_numbers<[1], [0], [0], [1], [0, 0, 1, 1], [], []>} : vector<32x16xf32>, vector<16x16xf32>, vector<32x16xf32> -> vector<32x16xf32>
    %c0_73 = arith.constant 0 : index
    %c0_74 = arith.constant 0 : index
    %82 = vector.load %arg4[%c0_73, %c0_74] : memref<16x128xf32, #tpu.memory_space<vmem>>, vector<16x128xf32>
    %cst_75 = arith.constant dense<0.000000e+00> : vector<32x128xf32>
    %83 = tpu.matmul %81, %82, %cst_75 {dimension_numbers = #tpu.dot_dimension_numbers<[1], [0], [0], [1], [0, 0, 1, 1], [], []>} : vector<32x16xf32>, vector<16x128xf32>, vector<32x128xf32> -> vector<32x128xf32>
    %84 = arith.index_cast %c7_i32 : i32 to index
    %c0_76 = arith.constant 0 : index
    %c0_77 = arith.constant 0 : index
    %85 = vector.load %arg5[%84, %c0_76, %c0_77] : memref<8x32x128xf32, #tpu.memory_space<vmem>>, vector<1x32x128xf32>
    %86 = vector.shape_cast %85 : vector<1x32x128xf32> to vector<32x128xf32>
    %87 = vector.shape_cast %83 : vector<32x128xf32> to vector<1x32x128xf32>
    tpu.vector_store %arg5[%84, %c0_76, %c0_77], %87 {strides = array<i32>} : memref<8x32x128xf32, #tpu.memory_space<vmem>>, vector<1x32x128xf32>,
    %c8_i32 = arith.constant 8 : i32
    return
  }
  func.func @transform_0(%arg0: i32, %arg1: i32) -> (i32, i32, i32) {
    %c0_i32 = arith.constant 0 : i32
    %c0_i32_0 = arith.constant 0 : i32
    %c0_i32_1 = arith.constant 0 : i32
    return %arg0, %c0_i32, %c0_i32_0 : i32, i32, i32
  }
  func.func @transform_1(%arg0: i32, %arg1: i32) -> (i32, i32) {
    %c0_i32 = arith.constant 0 : i32
    %c0_i32_0 = arith.constant 0 : i32
    return %arg1, %c0_i32 : i32, i32
  }
  func.func @transform_2(%arg0: i32, %arg1: i32) -> (i32, i32) {
    %c0_i32 = arith.constant 0 : i32
    %c0_i32_0 = arith.constant 0 : i32
    %c0_i32_1 = arith.constant 0 : i32
    return %c0_i32, %c0_i32_0 : i32, i32
  }
  func.func @transform_3(%arg0: i32, %arg1: i32) -> (i32, i32, i32) {
    %c0_i32 = arith.constant 0 : i32
    %c0_i32_0 = arith.constant 0 : i32
    return %arg0, %arg1, %c0_i32 : i32, i32, i32
  }
}

</mosaic_0001>

<llo_original>
// kernel: tpu_custom_call.1
$region0: #{tpu_custom_call.1}
  #allocation0 [shape = 'u32[]', space=smem, size = 0x4, offset = 0x4, fixed_abs, tag = 'smem constant byte address 0x4 - core index']
  #allocation1 [shape = 'u32[144,128]{1,0:T(1,128)}', space=vmem, size = 0x12000, scoped, tag = 'internal scratch']
  %s0 = inlined_call_operand.hbm [shape: f32[8,16,16], index: 0, kind: input, shape index: {}]
  %s1 = inlined_call_operand.vmem [shape: f32[32,16], index: 1, kind: input, shape index: {}]
  %s2 = inlined_call_operand.vmem [shape: f32[16,128], index: 2, kind: input, shape index: {}]
  %s3 = inlined_call_operand.hbm [shape: f32[8,32,128], index: 3, kind: output, shape index: {}]
  %s4 = sld [smem:[#allocation0]]
  $region26: #{tpu_custom_call.1} parent=0
    _
  %s6 = ssub.s32 1, %s4
  %s7 = scalar_select 0, %s6, %s4
  $region1: #{tpu_custom_call.1} parent=0
    #allocation2 [shape = 'u8[65536]{0}', space=vmem, size = 0x10000, scoped, tag = 'input window, operand 0, single buffered']
    #allocation3 [shape = 's32[1]{0}', space=sflag, size = 0x4, scoped, tag = 'scoped memory for tpu_custom_call.1']
    #allocation4 [shape = 's32[1]{0}', space=sflag, size = 0x4, scoped, tag = 'scoped memory for tpu_custom_call.1']
    #allocation5 [shape = 'u8[131072]{0}', space=vmem, size = 0x20000, scoped, tag = 'output window, operand 0, single buffered']
    %8 = vsyncpa [#allocation3], 0
    %9 = vsyncpa [#allocation4], 0
    // Predicated region
    $region2: #{tpu_custom_call.1} parent=1 // pred_check
      _
    $region3: #{tpu_custom_call.1} parent=1 // pred_check_branch
      %11 = sbr.rel (0) target = $region5
    $region4: #{tpu_custom_call.1} parent=1 // pred_region
      %s13 = ssub.s32 2048, 2048
      %14 = vsyncadd [#allocation3], %s13
      %s15 = sshll.u32 [#allocation2], 4
      %s16 = int_to_ptr.vmem [resolvable:$true] %s15
      %21 = dma.hbm_to_vmem [thread:$0]  %s0, 2048, %s16, [#allocation3], 128, 128, 8
    $region5: #{tpu_custom_call.1} parent=1 // pred_fallthru
      _
    // Predicated region
    $region6: #{tpu_custom_call.1} parent=1 // pred_check
      _
    $region7: #{tpu_custom_call.1} parent=1 // pred_check_branch
      %23 = sbr.rel (0) target = $region9
    $region8: #{tpu_custom_call.1} parent=1 // pred_region
      _
    $region9: #{tpu_custom_call.1} parent=1 // pred_fallthru
      _
    // Predicated region
    $region10: #{tpu_custom_call.1} parent=1 // pred_check
      _
    $region11: #{tpu_custom_call.1} parent=1 // pred_check_branch
      %25 = sbr.rel (0) target = $region13
    $region12: #{tpu_custom_call.1} parent=1 // pred_region
      _
    $region13: #{tpu_custom_call.1} parent=1 // pred_fallthru
      _
    // Predicated region
    $region14: #{tpu_custom_call.1} parent=1 // pred_check
      _
    $region15: #{tpu_custom_call.1} parent=1 // pred_check_branch
      %27 = sbr.rel (0) target = $region17
    $region16: #{tpu_custom_call.1} parent=1 // pred_region
      %28 = dma.done [#allocation3], 2048
    $region17: #{tpu_custom_call.1} parent=1 // pred_fallthru
      _
    %v29 = vld [vmem:[#allocation2] sm:$0xff]
    %v30 = vld [vmem:[#allocation2 + $0x8] sm:$0xff]
    %v31 = vld [vmem:[%s1] sm:$0xff]
    %v32 = vld [vmem:[%s1 + $0x8] sm:$0xff]
    %v33 = vld [vmem:[%s1 + $0x10] sm:$0xff]
    %v34 = vld [vmem:[%s1 + $0x18] sm:$0xff]
    %vm35 = vcmask 130048
    %v37 = vsel %vm35, %v31, 0
    %v40 = vsel %vm35, %v32, 0
    %v43 = vsel %vm35, %v33, 0
    %v46 = vsel %vm35, %v34, 0
    %48 = vmatprep.subr.mxu0 0.0
    %49 = vmatpush1.msra.mxu0 0.0
    %50 = vmatprep.subr.mxu0 0.0
    %51 = vmatpush1.msra.mxu0 0.0
    %52 = vmatprep.subr.mxu0 0.0
    %53 = vmatpush1.msra.mxu0 0.0
    %54 = vmatprep.subr.mxu0 0.0
    %55 = vmatpush1.msra.mxu0 0.0
    %56 = vmatprep.subr.mxu0 0.0
    %57 = vmatpush1.msra.mxu0 0.0
    %58 = vmatprep.subr.mxu0 0.0
    %59 = vmatpush1.msra.mxu0 0.0
    %60 = vmatprep.subr.mxu0 0.0
    %61 = vmatpush1.msra.mxu0 0.0
    %62 = vmatprep.subr.mxu0 0.0
    %63 = vmatpush1.msra.mxu0 0.0
    %64 = vmatprep.subr.mxu0 0.0
    %65 = vmatpush1.msra.mxu0 0.0
    %66 = vmatprep.subr.mxu0 0.0
    %67 = vmatpush1.msra.mxu0 0.0
    %68 = vmatprep.subr.mxu0 0.0
    %69 = vmatpush1.msra.mxu0 0.0
    %70 = vmatprep.subr.mxu0 0.0
    %71 = vmatpush1.msra.mxu0 0.0
    %72 = vmatprep.subr.mxu0 0.0
    %73 = vmatpush1.msra.mxu0 0.0
    %74 = vmatprep.subr.mxu0 0.0
    %75 = vmatpush1.msra.mxu0 0.0
    %76 = vmatprep.subr.mxu0 0.0
    %77 = vmatpush1.msra.mxu0 %v30
    %78 = vmatprep.subr.mxu0 0.0
    %79 = vmatpush1.msra.mxu0 %v29
    %80 = vmatprep.subr.mxu0 0.0
    %81 = vmatpush2.msra.mxu0 0.0
    %82 = vmatprep.subr.mxu0 0.0
    %83 = vmatpush2.msra.mxu0 0.0
    %84 = vmatprep.subr.mxu0 0.0
    %85 = vmatpush2.msra.mxu0 0.0
    %86 = vmatprep.subr.mxu0 0.0
    %87 = vmatpush2.msra.mxu0 0.0
    %88 = vmatprep.subr.mxu0 0.0
    %89 = vmatpush2.msra.mxu0 0.0
    %90 = vmatprep.subr.mxu0 0.0
    %91 = vmatpush2.msra.mxu0 0.0
    %92 = vmatprep.subr.mxu0 0.0
    %93 = vmatpush2.msra.mxu0 0.0
    %94 = vmatprep.subr.mxu0 0.0
    %95 = vmatpush2.msra.mxu0 0.0
    %96 = vmatprep.subr.mxu0 0.0
    %97 = vmatpush2.msra.mxu0 0.0
    %98 = vmatprep.subr.mxu0 0.0
    %99 = vmatpush2.msra.mxu0 0.0
    %100 = vmatprep.subr.mxu0 0.0
    %101 = vmatpush2.msra.mxu0 0.0
    %102 = vmatprep.subr.mxu0 0.0
    %103 = vmatpush2.msra.mxu0 0.0
    %104 = vmatprep.subr.mxu0 0.0
    %105 = vmatpush2.msra.mxu0 0.0
    %106 = vmatprep.subr.mxu0 0.0
    %107 = vmatpush2.msra.mxu0 0.0
    %108 = vmatprep.subr.mxu0 0.0
    %109 = vmatpush2.msra.mxu0 0.0
    %110 = vmatprep.subr.mxu0 0.0
    %111 = vmatpush2.msra.mxu0 0.0
    %112 = vmatprep.mubr.f32.mxu0 0.0
    %113 = vmatmul.mubr.f32.gmra.mxu0 %v37
    %v114 = vpop.f32.mrf.mxu0
    %v115 = vadd.f32 0.0, %v114
    %v116 = vpop.f32.mrf.mxu0
    %117 = vmatprep.mubr.f32.mxu0 0.0
    %118 = vmatmul.mubr.f32.gmra.mxu0 %v40
    %v119 = vpop.f32.mrf.mxu0
    %v120 = vadd.f32 0.0, %v119
    %v121 = vpop.f32.mrf.mxu0
    %122 = vmatprep.mubr.f32.mxu0 0.0
    %123 = vmatmul.mubr.f32.gmra.mxu0 %v43
    %v124 = vpop.f32.mrf.mxu0
    %v125 = vadd.f32 0.0, %v124
    %v126 = vpop.f32.mrf.mxu0
    %127 = vmatprep.mubr.f32.mxu0 0.0
    %128 = vmatmul.mubr.f32.gmra.mxu0 %v46
    %v129 = vpop.f32.mrf.mxu0
    %v130 = vadd.f32 0.0, %v129
    %v131 = vpop.f32.mrf.mxu0
    %132 = vdwg.mxu0
    %v133 = vld [vmem:[%s2] sm:$0xff]
    %v134 = vld [vmem:[%s2 + $0x8] sm:$0xff]
    %v136 = vsel %vm35, %v115, 0
    %v139 = vsel %vm35, %v120, 0
    %v142 = vsel %vm35, %v125, 0
    %v145 = vsel %vm35, %v130, 0
    %147 = vmatprep.subr.mxu0 0.0
    %148 = vmatpush1.msra.mxu0 0.0
    %149 = vmatprep.subr.mxu0 0.0
    %150 = vmatpush1.msra.mxu0 0.0
    %151 = vmatprep.subr.mxu0 0.0
    %152 = vmatpush1.msra.mxu0 0.0
    %153 = vmatprep.subr.mxu0 0.0
    %154 = vmatpush1.msra.mxu0 0.0
    %155 = vmatprep.subr.mxu0 0.0
    %156 = vmatpush1.msra.mxu0 0.0
    %157 = vmatprep.subr.mxu0 0.0
    %158 = vmatpush1.msra.mxu0 0.0
    %159 = vmatprep.subr.mxu0 0.0
    %160 = vmatpush1.msra.mxu0 0.0
    %161 = vmatprep.subr.mxu0 0.0
    %162 = vmatpush1.msra.mxu0 0.0
    %163 = vmatprep.subr.mxu0 0.0
    %164 = vmatpush1.msra.mxu0 0.0
    %165 = vmatprep.subr.mxu0 0.0
    %166 = vmatpush1.msra.mxu0 0.0
    %167 = vmatprep.subr.mxu0 0.0
    %168 = vmatpush1.msra.mxu0 0.0
    %169 = vmatprep.subr.mxu0 0.0
    %170 = vmatpush1.msra.mxu0 0.0
    %171 = vmatprep.subr.mxu0 0.0
    %172 = vmatpush1.msra.mxu0 0.0
    %173 = vmatprep.subr.mxu0 0.0
    %174 = vmatpush1.msra.mxu0 0.0
    %175 = vmatprep.subr.mxu0 0.0
    %176 = vmatpush1.msra.mxu0 %v134
    %177 = vmatprep.subr.mxu0 0.0
    %178 = vmatpush1.msra.mxu0 %v133
    %179 = vmatprep.subr.mxu0 0.0
    %180 = vmatpush2.msra.mxu0 0.0
    %181 = vmatprep.subr.mxu0 0.0
    %182 = vmatpush2.msra.mxu0 0.0
    %183 = vmatprep.subr.mxu0 0.0
    %184 = vmatpush2.msra.mxu0 0.0
    %185 = vmatprep.subr.mxu0 0.0
    %186 = vmatpush2.msra.mxu0 0.0
    %187 = vmatprep.subr.mxu0 0.0
    %188 = vmatpush2.msra.mxu0 0.0
    %189 = vmatprep.subr.mxu0 0.0
    %190 = vmatpush2.msra.mxu0 0.0
    %191 = vmatprep.subr.mxu0 0.0
    %192 = vmatpush2.msra.mxu0 0.0
    %193 = vmatprep.subr.mxu0 0.0
    %194 = vmatpush2.msra.mxu0 0.0
    %195 = vmatprep.subr.mxu0 0.0
    %196 = vmatpush2.msra.mxu0 0.0
    %197 = vmatprep.subr.mxu0 0.0
    %198 = vmatpush2.msra.mxu0 0.0
    %199 = vmatprep.subr.mxu0 0.0
    %200 = vmatpush2.msra.mxu0 0.0
    %201 = vmatprep.subr.mxu0 0.0
    %202 = vmatpush2.msra.mxu0 0.0
    %203 = vmatprep.subr.mxu0 0.0
    %204 = vmatpush2.msra.mxu0 0.0
    %205 = vmatprep.subr.mxu0 0.0
    %206 = vmatpush2.msra.mxu0 0.0
    %207 = vmatprep.subr.mxu0 0.0
    %208 = vmatpush2.msra.mxu0 0.0
    %209 = vmatprep.subr.mxu0 0.0
    %210 = vmatpush2.msra.mxu0 0.0
    %211 = vmatprep.mubr.f32.mxu0 0.0
    %212 = vmatmul.mubr.f32.gmra.mxu0 %v136
    %v213 = vpop.f32.mrf.mxu0
    %v214 = vadd.f32 0.0, %v213
    %v215 = vpop.f32.mrf.mxu0
    %216 = vmatprep.mubr.f32.mxu0 0.0
    %217 = vmatmul.mubr.f32.gmra.mxu0 %v139
    %v218 = vpop.f32.mrf.mxu0
    %v219 = vadd.f32 0.0, %v218
    %v220 = vpop.f32.mrf.mxu0
    %221 = vmatprep.mubr.f32.mxu0 0.0
    %222 = vmatmul.mubr.f32.gmra.mxu0 %v142
    %v223 = vpop.f32.mrf.mxu0
    %v224 = vadd.f32 0.0, %v223
    %v225 = vpop.f32.mrf.mxu0
    %226 = vmatprep.mubr.f32.mxu0 0.0
    %227 = vmatmul.mubr.f32.gmra.mxu0 %v145
    %v228 = vpop.f32.mrf.mxu0
    %v229 = vadd.f32 0.0, %v228
    %v230 = vpop.f32.mrf.mxu0
    %231 = vdwg.mxu0
    %232 = vst [vmem:[#allocation5] sm:$0xff] %v214
    %233 = vst [vmem:[#allocation5 + $0x8] sm:$0xff] %v219
    %234 = vst [vmem:[#allocation5 + $0x10] sm:$0xff] %v224
    %235 = vst [vmem:[#allocation5 + $0x18] sm:$0xff] %v229
    %s236 = scalar_lea.vmem [#allocation2], 16
    %v237 = vld [vmem:[%s236] sm:$0xff]
    %v238 = vld [vmem:[%s236 + $0x8] sm:$0xff]
    %v239 = vld [vmem:[%s1] sm:$0xff]
    %v240 = vld [vmem:[%s1 + $0x8] sm:$0xff]
    %v241 = vld [vmem:[%s1 + $0x10] sm:$0xff]
    %v242 = vld [vmem:[%s1 + $0x18] sm:$0xff]
    %v244 = vsel %vm35, %v239, 0
    %v247 = vsel %vm35, %v240, 0
    %v250 = vsel %vm35, %v241, 0
    %v253 = vsel %vm35, %v242, 0
    %255 = vmatprep.subr.mxu0 0.0
    %256 = vmatpush1.msra.mxu0 0.0
    %257 = vmatprep.subr.mxu0 0.0
    %258 = vmatpush1.msra.mxu0 0.0
    %259 = vmatprep.subr.mxu0 0.0
    %260 = vmatpush1.msra.mxu0 0.0
    %261 = vmatprep.subr.mxu0 0.0
    %262 = vmatpush1.msra.mxu0 0.0
    %263 = vmatprep.subr.mxu0 0.0
    %264 = vmatpush1.msra.mxu0 0.0
    %265 = vmatprep.subr.mxu0 0.0
    %266 = vmatpush1.msra.mxu0 0.0
    %267 = vmatprep.subr.mxu0 0.0
    %268 = vmatpush1.msra.mxu0 0.0
    %269 = vmatprep.subr.mxu0 0.0
    %270 = vmatpush1.msra.mxu0 0.0
    %271 = vmatprep.subr.mxu0 0.0
    %272 = vmatpush1.msra.mxu0 0.0
    %273 = vmatprep.subr.mxu0 0.0
    %274 = vmatpush1.msra.mxu0 0.0
    %275 = vmatprep.subr.mxu0 0.0
    %276 = vmatpush1.msra.mxu0 0.0
    %277 = vmatprep.subr.mxu0 0.0
    %278 = vmatpush1.msra.mxu0 0.0
    %279 = vmatprep.subr.mxu0 0.0
    %280 = vmatpush1.msra.mxu0 0.0
    %281 = vmatprep.subr.mxu0 0.0
    %282 = vmatpush1.msra.mxu0 0.0
    %283 = vmatprep.subr.mxu0 0.0
    %284 = vmatpush1.msra.mxu0 %v238
    %285 = vmatprep.subr.mxu0 0.0
    %286 = vmatpush1.msra.mxu0 %v237
    %287 = vmatprep.subr.mxu0 0.0
    %288 = vmatpush2.msra.mxu0 0.0
    %289 = vmatprep.subr.mxu0 0.0
    %290 = vmatpush2.msra.mxu0 0.0
    %291 = vmatprep.subr.mxu0 0.0
    %292 = vmatpush2.msra.mxu0 0.0
    %293 = vmatprep.subr.mxu0 0.0
    %294 = vmatpush2.msra.mxu0 0.0
    %295 = vmatprep.subr.mxu0 0.0
    %296 = vmatpush2.msra.mxu0 0.0
    %297 = vmatprep.subr.mxu0 0.0
    %298 = vmatpush2.msra.mxu0 0.0
    %299 = vmatprep.subr.mxu0 0.0
    %300 = vmatpush2.msra.mxu0 0.0
    %301 = vmatprep.subr.mxu0 0.0
    %302 = vmatpush2.msra.mxu0 0.0
    %303 = vmatprep.subr.mxu0 0.0
    %304 = vmatpush2.msra.mxu0 0.0
    %305 = vmatprep.subr.mxu0 0.0
    %306 = vmatpush2.msra.mxu0 0.0
    %307 = vmatprep.subr.mxu0 0.0
    %308 = vmatpush2.msra.mxu0 0.0
    %309 = vmatprep.subr.mxu0 0.0
    %310 = vmatpush2.msra.mxu0 0.0
    %311 = vmatprep.subr.mxu0 0.0
    %312 = vmatpush2.msra.mxu0 0.0
    %313 = vmatprep.subr.mxu0 0.0
    %314 = vmatpush2.msra.mxu0 0.0
    %315 = vmatprep.subr.mxu0 0.0
    %316 = vmatpush2.msra.mxu0 0.0
    %317 = vmatprep.subr.mxu0 0.0
    %318 = vmatpush2.msra.mxu0 0.0
    %319 = vmatprep.mubr.f32.mxu0 0.0
    %320 = vmatmul.mubr.f32.gmra.mxu0 %v244
    %v321 = vpop.f32.mrf.mxu0
    %v322 = vadd.f32 0.0, %v321
    %v323 = vpop.f32.mrf.mxu0
    %324 = vmatprep.mubr.f32.mxu0 0.0
    %325 = vmatmul.mubr.f32.gmra.mxu0 %v247
    %v326 = vpop.f32.mrf.mxu0
    %v327 = vadd.f32 0.0, %v326
    %v328 = vpop.f32.mrf.mxu0
    %329 = vmatprep.mubr.f32.mxu0 0.0
    %330 = vmatmul.mubr.f32.gmra.mxu0 %v250
    %v331 = vpop.f32.mrf.mxu0
    %v332 = vadd.f32 0.0, %v331
    %v333 = vpop.f32.mrf.mxu0
    %334 = vmatprep.mubr.f32.mxu0 0.0
    %335 = vmatmul.mubr.f32.gmra.mxu0 %v253
    %v336 = vpop.f32.mrf.mxu0
    %v337 = vadd.f32 0.0, %v336
    %v338 = vpop.f32.mrf.mxu0
    %339 = vdwg.mxu0
    %v340 = vld [vmem:[%s2] sm:$0xff]
    %v341 = vld [vmem:[%s2 + $0x8] sm:$0xff]
    %v343 = vsel %vm35, %v322, 0
    %v346 = vsel %vm35, %v327, 0
    %v349 = vsel %vm35, %v332, 0
    %v352 = vsel %vm35, %v337, 0
    %354 = vmatprep.subr.mxu0 0.0
    %355 = vmatpush1.msra.mxu0 0.0
    %356 = vmatprep.subr.mxu0 0.0
    %357 = vmatpush1.msra.mxu0 0.0
    %358 = vmatprep.subr.mxu0 0.0
    %359 = vmatpush1.msra.mxu0 0.0
    %360 = vmatprep.subr.mxu0 0.0
    %361 = vmatpush1.msra.mxu0 0.0
    %362 = vmatprep.subr.mxu0 0.0
    %363 = vmatpush1.msra.mxu0 0.0
    %364 = vmatprep.subr.mxu0 0.0
    %365 = vmatpush1.msra.mxu0 0.0
    %366 = vmatprep.subr.mxu0 0.0
    %367 = vmatpush1.msra.mxu0 0.0
    %368 = vmatprep.subr.mxu0 0.0
    %369 = vmatpush1.msra.mxu0 0.0
    %370 = vmatprep.subr.mxu0 0.0
    %371 = vmatpush1.msra.mxu0 0.0
    %372 = vmatprep.subr.mxu0 0.0
    %373 = vmatpush1.msra.mxu0 0.0
    %374 = vmatprep.subr.mxu0 0.0
    %375 = vmatpush1.msra.mxu0 0.0
    %376 = vmatprep.subr.mxu0 0.0
    %377 = vmatpush1.msra.mxu0 0.0
    %378 = vmatprep.subr.mxu0 0.0
    %379 = vmatpush1.msra.mxu0 0.0
    %380 = vmatprep.subr.mxu0 0.0
    %381 = vmatpush1.msra.mxu0 0.0
    %382 = vmatprep.subr.mxu0 0.0
    %383 = vmatpush1.msra.mxu0 %v341
    %384 = vmatprep.subr.mxu0 0.0
    %385 = vmatpush1.msra.mxu0 %v340
    %386 = vmatprep.subr.mxu0 0.0
    %387 = vmatpush2.msra.mxu0 0.0
    %388 = vmatprep.subr.mxu0 0.0
    %389 = vmatpush2.msra.mxu0 0.0
    %390 = vmatprep.subr.mxu0 0.0
    %391 = vmatpush2.msra.mxu0 0.0
    %392 = vmatprep.subr.mxu0 0.0
    %393 = vmatpush2.msra.mxu0 0.0
    %394 = vmatprep.subr.mxu0 0.0
    %395 = vmatpush2.msra.mxu0 0.0
    %396 = vmatprep.subr.mxu0 0.0
    %397 = vmatpush2.msra.mxu0 0.0
    %398 = vmatprep.subr.mxu0 0.0
    %399 = vmatpush2.msra.mxu0 0.0
    %400 = vmatprep.subr.mxu0 0.0
    %401 = vmatpush2.msra.mxu0 0.0
    %402 = vmatprep.subr.mxu0 0.0
    %403 = vmatpush2.msra.mxu0 0.0
    %404 = vmatprep.subr.mxu0 0.0
    %405 = vmatpush2.msra.mxu0 0.0
    %406 = vmatprep.subr.mxu0 0.0
    %407 = vmatpush2.msra.mxu0 0.0
    %408 = vmatprep.subr.mxu0 0.0
    %409 = vmatpush2.msra.mxu0 0.0
    %410 = vmatprep.subr.mxu0 0.0
    %411 = vmatpush2.msra.mxu0 0.0
    %412 = vmatprep.subr.mxu0 0.0
    %413 = vmatpush2.msra.mxu0 0.0
    %414 = vmatprep.subr.mxu0 0.0
    %415 = vmatpush2.msra.mxu0 0.0
    %416 = vmatprep.subr.mxu0 0.0
    %417 = vmatpush2.msra.mxu0 0.0
    %418 = vmatprep.mubr.f32.mxu0 0.0
    %419 = vmatmul.mubr.f32.gmra.mxu0 %v343
    %v420 = vpop.f32.mrf.mxu0
    %v421 = vadd.f32 0.0, %v420
    %v422 = vpop.f32.mrf.mxu0
    %423 = vmatprep.mubr.f32.mxu0 0.0
    %424 = vmatmul.mubr.f32.gmra.mxu0 %v346
    %v425 = vpop.f32.mrf.mxu0
    %v426 = vadd.f32 0.0, %v425
    %v427 = vpop.f32.mrf.mxu0
    %428 = vmatprep.mubr.f32.mxu0 0.0
    %429 = vmatmul.mubr.f32.gmra.mxu0 %v349
    %v430 = vpop.f32.mrf.mxu0
    %v431 = vadd.f32 0.0, %v430
    %v432 = vpop.f32.mrf.mxu0
    %433 = vmatprep.mubr.f32.mxu0 0.0
    %434 = vmatmul.mubr.f32.gmra.mxu0 %v352
    %v435 = vpop.f32.mrf.mxu0
    %v436 = vadd.f32 0.0, %v435
    %v437 = vpop.f32.mrf.mxu0
    %438 = vdwg.mxu0
    %s439 = scalar_lea.vmem [#allocation5], 32
    %440 = vst [vmem:[%s439] sm:$0xff] %v421
    %441 = vst [vmem:[%s439 + $0x8] sm:$0xff] %v426
    %442 = vst [vmem:[%s439 + $0x10] sm:$0xff] %v431
    %443 = vst [vmem:[%s439 + $0x18] sm:$0xff] %v436
    %s444 = scalar_lea.vmem [#allocation2], 32
    %v445 = vld [vmem:[%s444] sm:$0xff]
    %v446 = vld [vmem:[%s444 + $0x8] sm:$0xff]
    %v447 = vld [vmem:[%s1] sm:$0xff]
    %v448 = vld [vmem:[%s1 + $0x8] sm:$0xff]
    %v449 = vld [vmem:[%s1 + $0x10] sm:$0xff]
    %v450 = vld [vmem:[%s1 + $0x18] sm:$0xff]
    %v452 = vsel %vm35, %v447, 0
    %v455 = vsel %vm35, %v448, 0
    %v458 = vsel %vm35, %v449, 0
    %v461 = vsel %vm35, %v450, 0
    %463 = vmatprep.subr.mxu0 0.0
    %464 = vmatpush1.msra.mxu0 0.0
    %465 = vmatprep.subr.mxu0 0.0
    %466 = vmatpush1.msra.mxu0 0.0
    %467 = vmatprep.subr.mxu0 0.0
    %468 = vmatpush1.msra.mxu0 0.0
    %469 = vmatprep.subr.mxu0 0.0
    %470 = vmatpush1.msra.mxu0 0.0
    %471 = vmatprep.subr.mxu0 0.0
    %472 = vmatpush1.msra.mxu0 0.0
    %473 = vmatprep.subr.mxu0 0.0
    %474 = vmatpush1.msra.mxu0 0.0
    %475 = vmatprep.subr.mxu0 0.0
    %476 = vmatpush1.msra.mxu0 0.0
    %477 = vmatprep.subr.mxu0 0.0
    %478 = vmatpush1.msra.mxu0 0.0
    %479 = vmatprep.subr.mxu0 0.0
    %480 = vmatpush1.msra.mxu0 0.0
    %481 = vmatprep.subr.mxu0 0.0
    %482 = vmatpush1.msra.mxu0 0.0
    %483 = vmatprep.subr.mxu0 0.0
    %484 = vmatpush1.msra.mxu0 0.0
    %485 = vmatprep.subr.mxu0 0.0
    %486 = vmatpush1.msra.mxu0 0.0
    %487 = vmatprep.subr.mxu0 0.0
    %488 = vmatpush1.msra.mxu0 0.0
    %489 = vmatprep.subr.mxu0 0.0
    %490 = vmatpush1.msra.mxu0 0.0
    %491 = vmatprep.subr.mxu0 0.0
    %492 = vmatpush1.msra.mxu0 %v446
    %493 = vmatprep.subr.mxu0 0.0
    %494 = vmatpush1.msra.mxu0 %v445
    %495 = vmatprep.subr.mxu0 0.0
    %496 = vmatpush2.msra.mxu0 0.0
    %497 = vmatprep.subr.mxu0 0.0
    %498 = vmatpush2.msra.mxu0 0.0
    %499 = vmatprep.subr.mxu0 0.0
    %500 = vmatpush2.msra.mxu0 0.0
    %501 = vmatprep.subr.mxu0 0.0
    %502 = vmatpush2.msra.mxu0 0.0
    %503 = vmatprep.subr.mxu0 0.0
    %504 = vmatpush2.msra.mxu0 0.0
    %505 = vmatprep.subr.mxu0 0.0
    %506 = vmatpush2.msra.mxu0 0.0
    %507 = vmatprep.subr.mxu0 0.0
    %508 = vmatpush2.msra.mxu0 0.0
    %509 = vmatprep.subr.mxu0 0.0
    %510 = vmatpush2.msra.mxu0 0.0
    %511 = vmatprep.subr.mxu0 0.0
    %512 = vmatpush2.msra.mxu0 0.0
    %513 = vmatprep.subr.mxu0 0.0
    %514 = vmatpush2.msra.mxu0 0.0
    %515 = vmatprep.subr.mxu0 0.0
    %516 = vmatpush2.msra.mxu0 0.0
    %517 = vmatprep.subr.mxu0 0.0
    %518 = vmatpush2.msra.mxu0 0.0
    %519 = vmatprep.subr.mxu0 0.0
    %520 = vmatpush2.msra.mxu0 0.0
    %521 = vmatprep.subr.mxu0 0.0
    %522 = vmatpush2.msra.mxu0 0.0
    %523 = vmatprep.subr.mxu0 0.0
    %524 = vmatpush2.msra.mxu0 0.0
    %525 = vmatprep.subr.mxu0 0.0
    %526 = vmatpush2.msra.mxu0 0.0
    %527 = vmatprep.mubr.f32.mxu0 0.0
    %528 = vmatmul.mubr.f32.gmra.mxu0 %v452
    %v529 = vpop.f32.mrf.mxu0
    %v530 = vadd.f32 0.0, %v529
    %v531 = vpop.f32.mrf.mxu0
    %532 = vmatprep.mubr.f32.mxu0 0.0
    %533 = vmatmul.mubr.f32.gmra.mxu0 %v455
    %v534 = vpop.f32.mrf.mxu0
    %v535 = vadd.f32 0.0, %v534
    %v536 = vpop.f32.mrf.mxu0
    %537 = vmatprep.mubr.f32.mxu0 0.0
    %538 = vmatmul.mubr.f32.gmra.mxu0 %v458
    %v539 = vpop.f32.mrf.mxu0
    %v540 = vadd.f32 0.0, %v539
    %v541 = vpop.f32.mrf.mxu0
    %542 = vmatprep.mubr.f32.mxu0 0.0
    %543 = vmatmul.mubr.f32.gmra.mxu0 %v461
    %v544 = vpop.f32.mrf.mxu0
    %v545 = vadd.f32 0.0, %v544
    %v546 = vpop.f32.mrf.mxu0
    %547 = vdwg.mxu0
    %v548 = vld [vmem:[%s2] sm:$0xff]
    %v549 = vld [vmem:[%s2 + $0x8] sm:$0xff]
    %v551 = vsel %vm35, %v530, 0
    %v554 = vsel %vm35, %v535, 0
    %v557 = vsel %vm35, %v540, 0
    %v560 = vsel %vm35, %v545, 0
    %562 = vmatprep.subr.mxu0 0.0
    %563 = vmatpush1.msra.mxu0 0.0
    %564 = vmatprep.subr.mxu0 0.0
    %565 = vmatpush1.msra.mxu0 0.0
    %566 = vmatprep.subr.mxu0 0.0
    %567 = vmatpush1.msra.mxu0 0.0
    %568 = vmatprep.subr.mxu0 0.0
    %569 = vmatpush1.msra.mxu0 0.0
    %570 = vmatprep.subr.mxu0 0.0
    %571 = vmatpush1.msra.mxu0 0.0
    %572 = vmatprep.subr.mxu0 0.0
    %573 = vmatpush1.msra.mxu0 0.0
    %574 = vmatprep.subr.mxu0 0.0
    %575 = vmatpush1.msra.mxu0 0.0
    %576 = vmatprep.subr.mxu0 0.0
    %577 = vmatpush1.msra.mxu0 0.0
    %578 = vmatprep.subr.mxu0 0.0
    %579 = vmatpush1.msra.mxu0 0.0
    %580 = vmatprep.subr.mxu0 0.0
    %581 = vmatpush1.msra.mxu0 0.0
    %582 = vmatprep.subr.mxu0 0.0
    %583 = vmatpush1.msra.mxu0 0.0
    %584 = vmatprep.subr.mxu0 0.0
    %585 = vmatpush1.msra.mxu0 0.0
    %586 = vmatprep.subr.mxu0 0.0
    %587 = vmatpush1.msra.mxu0 0.0
    %588 = vmatprep.subr.mxu0 0.0
    %589 = vmatpush1.msra.mxu0 0.0
    %590 = vmatprep.subr.mxu0 0.0
    %591 = vmatpush1.msra.mxu0 %v549
    %592 = vmatprep.subr.mxu0 0.0
    %593 = vmatpush1.msra.mxu0 %v548
    %594 = vmatprep.subr.mxu0 0.0
    %595 = vmatpush2.msra.mxu0 0.0
    %596 = vmatprep.subr.mxu0 0.0
    %597 = vmatpush2.msra.mxu0 0.0
    %598 = vmatprep.subr.mxu0 0.0
    %599 = vmatpush2.msra.mxu0 0.0
    %600 = vmatprep.subr.mxu0 0.0
    %601 = vmatpush2.msra.mxu0 0.0
    %602 = vmatprep.subr.mxu0 0.0
    %603 = vmatpush2.msra.mxu0 0.0
    %604 = vmatprep.subr.mxu0 0.0
    %605 = vmatpush2.msra.mxu0 0.0
    %606 = vmatprep.subr.mxu0 0.0
    %607 = vmatpush2.msra.mxu0 0.0
    %608 = vmatprep.subr.mxu0 0.0
    %609 = vmatpush2.msra.mxu0 0.0
    %610 = vmatprep.subr.mxu0 0.0
    %611 = vmatpush2.msra.mxu0 0.0
    %612 = vmatprep.subr.mxu0 0.0
    %613 = vmatpush2.msra.mxu0 0.0
    %614 = vmatprep.subr.mxu0 0.0
    %615 = vmatpush2.msra.mxu0 0.0
    %616 = vmatprep.subr.mxu0 0.0
    %617 = vmatpush2.msra.mxu0 0.0
    %618 = vmatprep.subr.mxu0 0.0
    %619 = vmatpush2.msra.mxu0 0.0
    %620 = vmatprep.subr.mxu0 0.0
    %621 = vmatpush2.msra.mxu0 0.0
    %622 = vmatprep.subr.mxu0 0.0
    %623 = vmatpush2.msra.mxu0 0.0
    %624 = vmatprep.subr.mxu0 0.0
    %625 = vmatpush2.msra.mxu0 0.0
    %626 = vmatprep.mubr.f32.mxu0 0.0
    %627 = vmatmul.mubr.f32.gmra.mxu0 %v551
    %v628 = vpop.f32.mrf.mxu0
    %v629 = vadd.f32 0.0, %v628
    %v630 = vpop.f32.mrf.mxu0
    %631 = vmatprep.mubr.f32.mxu0 0.0
    %632 = vmatmul.mubr.f32.gmra.mxu0 %v554
    %v633 = vpop.f32.mrf.mxu0
    %v634 = vadd.f32 0.0, %v633
    %v635 = vpop.f32.mrf.mxu0
    %636 = vmatprep.mubr.f32.mxu0 0.0
    %637 = vmatmul.mubr.f32.gmra.mxu0 %v557
    %v638 = vpop.f32.mrf.mxu0
    %v639 = vadd.f32 0.0, %v638
    %v640 = vpop.f32.mrf.mxu0
    %641 = vmatprep.mubr.f32.mxu0 0.0
    %642 = vmatmul.mubr.f32.gmra.mxu0 %v560
    %v643 = vpop.f32.mrf.mxu0
    %v644 = vadd.f32 0.0, %v643
    %v645 = vpop.f32.mrf.mxu0
    %646 = vdwg.mxu0
    %s647 = scalar_lea.vmem [#allocation5], 64
    %648 = vst [vmem:[%s647] sm:$0xff] %v629
    %649 = vst [vmem:[%s647 + $0x8] sm:$0xff] %v634
    %650 = vst [vmem:[%s647 + $0x10] sm:$0xff] %v639
    %651 = vst [vmem:[%s647 + $0x18] sm:$0xff] %v644
    %s652 = scalar_lea.vmem [#allocation2], 48
    %v653 = vld [vmem:[%s652] sm:$0xff]
    %v654 = vld [vmem:[%s652 + $0x8] sm:$0xff]
    %v655 = vld [vmem:[%s1] sm:$0xff]
    %v656 = vld [vmem:[%s1 + $0x8] sm:$0xff]
    %v657 = vld [vmem:[%s1 + $0x10] sm:$0xff]
    %v658 = vld [vmem:[%s1 + $0x18] sm:$0xff]
    %v660 = vsel %vm35, %v655, 0
    %v663 = vsel %vm35, %v656, 0
    %v666 = vsel %vm35, %v657, 0
    %v669 = vsel %vm35, %v658, 0
    %671 = vmatprep.subr.mxu0 0.0
    %672 = vmatpush1.msra.mxu0 0.0
    %673 = vmatprep.subr.mxu0 0.0
    %674 = vmatpush1.msra.mxu0 0.0
    %675 = vmatprep.subr.mxu0 0.0
    %676 = vmatpush1.msra.mxu0 0.0
    %677 = vmatprep.subr.mxu0 0.0
    %678 = vmatpush1.msra.mxu0 0.0
    %679 = vmatprep.subr.mxu0 0.0
    %680 = vmatpush1.msra.mxu0 0.0
    %681 = vmatprep.subr.mxu0 0.0
    %682 = vmatpush1.msra.mxu0 0.0
    %683 = vmatprep.subr.mxu0 0.0
    %684 = vmatpush1.msra.mxu0 0.0
    %685 = vmatprep.subr.mxu0 0.0
    %686 = vmatpush1.msra.mxu0 0.0
    %687 = vmatprep.subr.mxu0 0.0
    %688 = vmatpush1.msra.mxu0 0.0
    %689 = vmatprep.subr.mxu0 0.0
    %690 = vmatpush1.msra.mxu0 0.0
    %691 = vmatprep.subr.mxu0 0.0
    %692 = vmatpush1.msra.mxu0 0.0
    %693 = vmatprep.subr.mxu0 0.0
    %694 = vmatpush1.msra.mxu0 0.0
    %695 = vmatprep.subr.mxu0 0.0
    %696 = vmatpush1.msra.mxu0 0.0
    %697 = vmatprep.subr.mxu0 0.0
    %698 = vmatpush1.msra.mxu0 0.0
    %699 = vmatprep.subr.mxu0 0.0
    %700 = vmatpush1.msra.mxu0 %v654
    %701 = vmatprep.subr.mxu0 0.0
    %702 = vmatpush1.msra.mxu0 %v653
    %703 = vmatprep.subr.mxu0 0.0
    %704 = vmatpush2.msra.mxu0 0.0
    %705 = vmatprep.subr.mxu0 0.0
    %706 = vmatpush2.msra.mxu0 0.0
    %707 = vmatprep.subr.mxu0 0.0
    %708 = vmatpush2.msra.mxu0 0.0
    %709 = vmatprep.subr.mxu0 0.0
    %710 = vmatpush2.msra.mxu0 0.0
    %711 = vmatprep.subr.mxu0 0.0
    %712 = vmatpush2.msra.mxu0 0.0
    %713 = vmatprep.subr.mxu0 0.0
    %714 = vmatpush2.msra.mxu0 0.0
    %715 = vmatprep.subr.mxu0 0.0
    %716 = vmatpush2.msra.mxu0 0.0
    %717 = vmatprep.subr.mxu0 0.0
    %718 = vmatpush2.msra.mxu0 0.0
    %719 = vmatprep.subr.mxu0 0.0
    %720 = vmatpush2.msra.mxu0 0.0
    %721 = vmatprep.subr.mxu0 0.0
    %722 = vmatpush2.msra.mxu0 0.0
    %723 = vmatprep.subr.mxu0 0.0
    %724 = vmatpush2.msra.mxu0 0.0
    %725 = vmatprep.subr.mxu0 0.0
    %726 = vmatpush2.msra.mxu0 0.0
    %727 = vmatprep.subr.mxu0 0.0
    %728 = vmatpush2.msra.mxu0 0.0
    %729 = vmatprep.subr.mxu0 0.0
    %730 = vmatpush2.msra.mxu0 0.0
    %731 = vmatprep.subr.mxu0 0.0
    %732 = vmatpush2.msra.mxu0 0.0
    %733 = vmatprep.subr.mxu0 0.0
    %734 = vmatpush2.msra.mxu0 0.0
    %735 = vmatprep.mubr.f32.mxu0 0.0
    %736 = vmatmul.mubr.f32.gmra.mxu0 %v660
    %v737 = vpop.f32.mrf.mxu0
    %v738 = vadd.f32 0.0, %v737
    %v739 = vpop.f32.mrf.mxu0
    %740 = vmatprep.mubr.f32.mxu0 0.0
    %741 = vmatmul.mubr.f32.gmra.mxu0 %v663
    %v742 = vpop.f32.mrf.mxu0
    %v743 = vadd.f32 0.0, %v742
    %v744 = vpop.f32.mrf.mxu0
    %745 = vmatprep.mubr.f32.mxu0 0.0
    %746 = vmatmul.mubr.f32.gmra.mxu0 %v666
    %v747 = vpop.f32.mrf.mxu0
    %v748 = vadd.f32 0.0, %v747
    %v749 = vpop.f32.mrf.mxu0
    %750 = vmatprep.mubr.f32.mxu0 0.0
    %751 = vmatmul.mubr.f32.gmra.mxu0 %v669
    %v752 = vpop.f32.mrf.mxu0
    %v753 = vadd.f32 0.0, %v752
    %v754 = vpop.f32.mrf.mxu0
    %755 = vdwg.mxu0
    %v756 = vld [vmem:[%s2] sm:$0xff]
    %v757 = vld [vmem:[%s2 + $0x8] sm:$0xff]
    %v759 = vsel %vm35, %v738, 0
    %v762 = vsel %vm35, %v743, 0
    %v765 = vsel %vm35, %v748, 0
    %v768 = vsel %vm35, %v753, 0
    %770 = vmatprep.subr.mxu0 0.0
    %771 = vmatpush1.msra.mxu0 0.0
    %772 = vmatprep.subr.mxu0 0.0
    %773 = vmatpush1.msra.mxu0 0.0
    %774 = vmatprep.subr.mxu0 0.0
    %775 = vmatpush1.msra.mxu0 0.0
    %776 = vmatprep.subr.mxu0 0.0
    %777 = vmatpush1.msra.mxu0 0.0
    %778 = vmatprep.subr.mxu0 0.0
    %779 = vmatpush1.msra.mxu0 0.0
    %780 = vmatprep.subr.mxu0 0.0
    %781 = vmatpush1.msra.mxu0 0.0
    %782 = vmatprep.subr.mxu0 0.0
    %783 = vmatpush1.msra.mxu0 0.0
    %784 = vmatprep.subr.mxu0 0.0
    %785 = vmatpush1.msra.mxu0 0.0
    %786 = vmatprep.subr.mxu0 0.0
    %787 = vmatpush1.msra.mxu0 0.0
    %788 = vmatprep.subr.mxu0 0.0
    %789 = vmatpush1.msra.mxu0 0.0
    %790 = vmatprep.subr.mxu0 0.0
    %791 = vmatpush1.msra.mxu0 0.0
    %792 = vmatprep.subr.mxu0 0.0
    %793 = vmatpush1.msra.mxu0 0.0
    %794 = vmatprep.subr.mxu0 0.0
    %795 = vmatpush1.msra.mxu0 0.0
    %796 = vmatprep.subr.mxu0 0.0
    %797 = vmatpush1.msra.mxu0 0.0
    %798 = vmatprep.subr.mxu0 0.0
    %799 = vmatpush1.msra.mxu0 %v757
    %800 = vmatprep.subr.mxu0 0.0
    %801 = vmatpush1.msra.mxu0 %v756
    %802 = vmatprep.subr.mxu0 0.0
    %803 = vmatpush2.msra.mxu0 0.0
    %804 = vmatprep.subr.mxu0 0.0
    %805 = vmatpush2.msra.mxu0 0.0
    %806 = vmatprep.subr.mxu0 0.0
    %807 = vmatpush2.msra.mxu0 0.0
    %808 = vmatprep.subr.mxu0 0.0
    %809 = vmatpush2.msra.mxu0 0.0
    %810 = vmatprep.subr.mxu0 0.0
    %811 = vmatpush2.msra.mxu0 0.0
    %812 = vmatprep.subr.mxu0 0.0
    %813 = vmatpush2.msra.mxu0 0.0
    %814 = vmatprep.subr.mxu0 0.0
    %815 = vmatpush2.msra.mxu0 0.0
    %816 = vmatprep.subr.mxu0 0.0
    %817 = vmatpush2.msra.mxu0 0.0
    %818 = vmatprep.subr.mxu0 0.0
    %819 = vmatpush2.msra.mxu0 0.0
    %820 = vmatprep.subr.mxu0 0.0
    %821 = vmatpush2.msra.mxu0 0.0
    %822 = vmatprep.subr.mxu0 0.0
    %823 = vmatpush2.msra.mxu0 0.0
    %824 = vmatprep.subr.mxu0 0.0
    %825 = vmatpush2.msra.mxu0 0.0
    %826 = vmatprep.subr.mxu0 0.0
    %827 = vmatpush2.msra.mxu0 0.0
    %828 = vmatprep.subr.mxu0 0.0
    %829 = vmatpush2.msra.mxu0 0.0
    %830 = vmatprep.subr.mxu0 0.0
    %831 = vmatpush2.msra.mxu0 0.0
    %832 = vmatprep.subr.mxu0 0.0
    %833 = vmatpush2.msra.mxu0 0.0
    %834 = vmatprep.mubr.f32.mxu0 0.0
    %835 = vmatmul.mubr.f32.gmra.mxu0 %v759
    %v836 = vpop.f32.mrf.mxu0
    %v837 = vadd.f32 0.0, %v836
    %v838 = vpop.f32.mrf.mxu0
    %839 = vmatprep.mubr.f32.mxu0 0.0
    %840 = vmatmul.mubr.f32.gmra.mxu0 %v762
    %v841 = vpop.f32.mrf.mxu0
    %v842 = vadd.f32 0.0, %v841
    %v843 = vpop.f32.mrf.mxu0
    %844 = vmatprep.mubr.f32.mxu0 0.0
    %845 = vmatmul.mubr.f32.gmra.mxu0 %v765
    %v846 = vpop.f32.mrf.mxu0
    %v847 = vadd.f32 0.0, %v846
    %v848 = vpop.f32.mrf.mxu0
    %849 = vmatprep.mubr.f32.mxu0 0.0
    %850 = vmatmul.mubr.f32.gmra.mxu0 %v768
    %v851 = vpop.f32.mrf.mxu0
    %v852 = vadd.f32 0.0, %v851
    %v853 = vpop.f32.mrf.mxu0
    %854 = vdwg.mxu0
    %s855 = scalar_lea.vmem [#allocation5], 96
    %856 = vst [vmem:[%s855] sm:$0xff] %v837
    %857 = vst [vmem:[%s855 + $0x8] sm:$0xff] %v842
    %858 = vst [vmem:[%s855 + $0x10] sm:$0xff] %v847
    %859 = vst [vmem:[%s855 + $0x18] sm:$0xff] %v852
    %s860 = scalar_lea.vmem [#allocation2], 64
    %v861 = vld [vmem:[%s860] sm:$0xff]
    %v862 = vld [vmem:[%s860 + $0x8] sm:$0xff]
    %v863 = vld [vmem:[%s1] sm:$0xff]
    %v864 = vld [vmem:[%s1 + $0x8] sm:$0xff]
    %v865 = vld [vmem:[%s1 + $0x10] sm:$0xff]
    %v866 = vld [vmem:[%s1 + $0x18] sm:$0xff]
    %v868 = vsel %vm35, %v863, 0
    %v871 = vsel %vm35, %v864, 0
    %v874 = vsel %vm35, %v865, 0
    %v877 = vsel %vm35, %v866, 0
    %879 = vmatprep.subr.mxu0 0.0
    %880 = vmatpush1.msra.mxu0 0.0
    %881 = vmatprep.subr.mxu0 0.0
    %882 = vmatpush1.msra.mxu0 0.0
    %883 = vmatprep.subr.mxu0 0.0
    %884 = vmatpush1.msra.mxu0 0.0
    %885 = vmatprep.subr.mxu0 0.0
    %886 = vmatpush1.msra.mxu0 0.0
    %887 = vmatprep.subr.mxu0 0.0
    %888 = vmatpush1.msra.mxu0 0.0
    %889 = vmatprep.subr.mxu0 0.0
    %890 = vmatpush1.msra.mxu0 0.0
    %891 = vmatprep.subr.mxu0 0.0
    %892 = vmatpush1.msra.mxu0 0.0
    %893 = vmatprep.subr.mxu0 0.0
    %894 = vmatpush1.msra.mxu0 0.0
    %895 = vmatprep.subr.mxu0 0.0
    %896 = vmatpush1.msra.mxu0 0.0
    %897 = vmatprep.subr.mxu0 0.0
    %898 = vmatpush1.msra.mxu0 0.0
    %899 = vmatprep.subr.mxu0 0.0
    %900 = vmatpush1.msra.mxu0 0.0
    %901 = vmatprep.subr.mxu0 0.0
    %902 = vmatpush1.msra.mxu0 0.0
    %903 = vmatprep.subr.mxu0 0.0
    %904 = vmatpush1.msra.mxu0 0.0
    %905 = vmatprep.subr.mxu0 0.0
    %906 = vmatpush1.msra.mxu0 0.0
    %907 = vmatprep.subr.mxu0 0.0
    %908 = vmatpush1.msra.mxu0 %v862
    %909 = vmatprep.subr.mxu0 0.0
    %910 = vmatpush1.msra.mxu0 %v861
    %911 = vmatprep.subr.mxu0 0.0
    %912 = vmatpush2.msra.mxu0 0.0
    %913 = vmatprep.subr.mxu0 0.0
    %914 = vmatpush2.msra.mxu0 0.0
    %915 = vmatprep.subr.mxu0 0.0
    %916 = vmatpush2.msra.mxu0 0.0
    %917 = vmatprep.subr.mxu0 0.0
    %918 = vmatpush2.msra.mxu0 0.0
    %919 = vmatprep.subr.mxu0 0.0
    %920 = vmatpush2.msra.mxu0 0.0
    %921 = vmatprep.subr.mxu0 0.0
    %922 = vmatpush2.msra.mxu0 0.0
    %923 = vmatprep.subr.mxu0 0.0
    %924 = vmatpush2.msra.mxu0 0.0
    %925 = vmatprep.subr.mxu0 0.0
    %926 = vmatpush2.msra.mxu0 0.0
    %927 = vmatprep.subr.mxu0 0.0
    %928 = vmatpush2.msra.mxu0 0.0
    %929 = vmatprep.subr.mxu0 0.0
    %930 = vmatpush2.msra.mxu0 0.0
    %931 = vmatprep.subr.mxu0 0.0
    %932 = vmatpush2.msra.mxu0 0.0
    %933 = vmatprep.subr.mxu0 0.0
    %934 = vmatpush2.msra.mxu0 0.0
    %935 = vmatprep.subr.mxu0 0.0
    %936 = vmatpush2.msra.mxu0 0.0
    %937 = vmatprep.subr.mxu0 0.0
    %938 = vmatpush2.msra.mxu0 0.0
    %939 = vmatprep.subr.mxu0 0.0
    %940 = vmatpush2.msra.mxu0 0.0
    %941 = vmatprep.subr.mxu0 0.0
    %942 = vmatpush2.msra.mxu0 0.0
    %943 = vmatprep.mubr.f32.mxu0 0.0
    %944 = vmatmul.mubr.f32.gmra.mxu0 %v868
    %v945 = vpop.f32.mrf.mxu0
    %v946 = vadd.f32 0.0, %v945
    %v947 = vpop.f32.mrf.mxu0
    %948 = vmatprep.mubr.f32.mxu0 0.0
    %949 = vmatmul.mubr.f32.gmra.mxu0 %v871
    %v950 = vpop.f32.mrf.mxu0
    %v951 = vadd.f32 0.0, %v950
    %v952 = vpop.f32.mrf.mxu0
    %953 = vmatprep.mubr.f32.mxu0 0.0
    %954 = vmatmul.mubr.f32.gmra.mxu0 %v874
    %v955 = vpop.f32.mrf.mxu0
    %v956 = vadd.f32 0.0, %v955
    %v957 = vpop.f32.mrf.mxu0
    %958 = vmatprep.mubr.f32.mxu0 0.0
    %959 = vmatmul.mubr.f32.gmra.mxu0 %v877
    %v960 = vpop.f32.mrf.mxu0
    %v961 = vadd.f32 0.0, %v960
    %v962 = vpop.f32.mrf.mxu0
    %963 = vdwg.mxu0
    %v964 = vld [vmem:[%s2] sm:$0xff]
    %v965 = vld [vmem:[%s2 + $0x8] sm:$0xff]
    %v967 = vsel %vm35, %v946, 0
    %v970 = vsel %vm35, %v951, 0
    %v973 = vsel %vm35, %v956, 0
    %v976 = vsel %vm35, %v961, 0
    %978 = vmatprep.subr.mxu0 0.0
    %979 = vmatpush1.msra.mxu0 0.0
    %980 = vmatprep.subr.mxu0 0.0
    %981 = vmatpush1.msra.mxu0 0.0
    %982 = vmatprep.subr.mxu0 0.0
    %983 = vmatpush1.msra.mxu0 0.0
    %984 = vmatprep.subr.mxu0 0.0
    %985 = vmatpush1.msra.mxu0 0.0
    %986 = vmatprep.subr.mxu0 0.0
    %987 = vmatpush1.msra.mxu0 0.0
    %988 = vmatprep.subr.mxu0 0.0
    %989 = vmatpush1.msra.mxu0 0.0
    %990 = vmatprep.subr.mxu0 0.0
    %991 = vmatpush1.msra.mxu0 0.0
    %992 = vmatprep.subr.mxu0 0.0
    %993 = vmatpush1.msra.mxu0 0.0
    %994 = vmatprep.subr.mxu0 0.0
    %995 = vmatpush1.msra.mxu0 0.0
    %996 = vmatprep.subr.mxu0 0.0
    %997 = vmatpush1.msra.mxu0 0.0
    %998 = vmatprep.subr.mxu0 0.0
    %999 = vmatpush1.msra.mxu0 0.0
    %1000 = vmatprep.subr.mxu0 0.0
    %1001 = vmatpush1.msra.mxu0 0.0
    %1002 = vmatprep.subr.mxu0 0.0
    %1003 = vmatpush1.msra.mxu0 0.0
    %1004 = vmatprep.subr.mxu0 0.0
    %1005 = vmatpush1.msra.mxu0 0.0
    %1006 = vmatprep.subr.mxu0 0.0
    %1007 = vmatpush1.msra.mxu0 %v965
    %1008 = vmatprep.subr.mxu0 0.0
    %1009 = vmatpush1.msra.mxu0 %v964
    %1010 = vmatprep.subr.mxu0 0.0
    %1011 = vmatpush2.msra.mxu0 0.0
    %1012 = vmatprep.subr.mxu0 0.0
    %1013 = vmatpush2.msra.mxu0 0.0
    %1014 = vmatprep.subr.mxu0 0.0
    %1015 = vmatpush2.msra.mxu0 0.0
    %1016 = vmatprep.subr.mxu0 0.0
    %1017 = vmatpush2.msra.mxu0 0.0
    %1018 = vmatprep.subr.mxu0 0.0
    %1019 = vmatpush2.msra.mxu0 0.0
    %1020 = vmatprep.subr.mxu0 0.0
    %1021 = vmatpush2.msra.mxu0 0.0
    %1022 = vmatprep.subr.mxu0 0.0
    %1023 = vmatpush2.msra.mxu0 0.0
    %1024 = vmatprep.subr.mxu0 0.0
    %1025 = vmatpush2.msra.mxu0 0.0
    %1026 = vmatprep.subr.mxu0 0.0
    %1027 = vmatpush2.msra.mxu0 0.0
    %1028 = vmatprep.subr.mxu0 0.0
    %1029 = vmatpush2.msra.mxu0 0.0
    %1030 = vmatprep.subr.mxu0 0.0
    %1031 = vmatpush2.msra.mxu0 0.0
    %1032 = vmatprep.subr.mxu0 0.0
    %1033 = vmatpush2.msra.mxu0 0.0
    %1034 = vmatprep.subr.mxu0 0.0
    %1035 = vmatpush2.msra.mxu0 0.0
    %1036 = vmatprep.subr.mxu0 0.0
    %1037 = vmatpush2.msra.mxu0 0.0
    %1038 = vmatprep.subr.mxu0 0.0
    %1039 = vmatpush2.msra.mxu0 0.0
    %1040 = vmatprep.subr.mxu0 0.0
    %1041 = vmatpush2.msra.mxu0 0.0
    %1042 = vmatprep.mubr.f32.mxu0 0.0
    %1043 = vmatmul.mubr.f32.gmra.mxu0 %v967
    %v1044 = vpop.f32.mrf.mxu0
    %v1045 = vadd.f32 0.0, %v1044
    %v1046 = vpop.f32.mrf.mxu0
    %1047 = vmatprep.mubr.f32.mxu0 0.0
    %1048 = vmatmul.mubr.f32.gmra.mxu0 %v970
    %v1049 = vpop.f32.mrf.mxu0
    %v1050 = vadd.f32 0.0, %v1049
    %v1051 = vpop.f32.mrf.mxu0
    %1052 = vmatprep.mubr.f32.mxu0 0.0
    %1053 = vmatmul.mubr.f32.gmra.mxu0 %v973
    %v1054 = vpop.f32.mrf.mxu0
    %v1055 = vadd.f32 0.0, %v1054
    %v1056 = vpop.f32.mrf.mxu0
    %1057 = vmatprep.mubr.f32.mxu0 0.0
    %1058 = vmatmul.mubr.f32.gmra.mxu0 %v976
    %v1059 = vpop.f32.mrf.mxu0
    %v1060 = vadd.f32 0.0, %v1059
    %v1061 = vpop.f32.mrf.mxu0
    %1062 = vdwg.mxu0
    %s1063 = scalar_lea.vmem [#allocation5], 128
    %1064 = vst [vmem:[%s1063] sm:$0xff] %v1045
    %1065 = vst [vmem:[%s1063 + $0x8] sm:$0xff] %v1050
    %1066 = vst [vmem:[%s1063 + $0x10] sm:$0xff] %v1055
    %1067 = vst [vmem:[%s1063 + $0x18] sm:$0xff] %v1060
    %s1068 = scalar_lea.vmem [#allocation2], 80
    %v1069 = vld [vmem:[%s1068] sm:$0xff]
    %v1070 = vld [vmem:[%s1068 + $0x8] sm:$0xff]
    %v1071 = vld [vmem:[%s1] sm:$0xff]
    %v1072 = vld [vmem:[%s1 + $0x8] sm:$0xff]
    %v1073 = vld [vmem:[%s1 + $0x10] sm:$0xff]
    %v1074 = vld [vmem:[%s1 + $0x18] sm:$0xff]
    %v1076 = vsel %vm35, %v1071, 0
    %v1079 = vsel %vm35, %v1072, 0
    %v1082 = vsel %vm35, %v1073, 0
    %v1085 = vsel %vm35, %v1074, 0
    %1087 = vmatprep.subr.mxu0 0.0
    %1088 = vmatpush1.msra.mxu0 0.0
    %1089 = vmatprep.subr.mxu0 0.0
    %1090 = vmatpush1.msra.mxu0 0.0
    %1091 = vmatprep.subr.mxu0 0.0
    %1092 = vmatpush1.msra.mxu0 0.0
    %1093 = vmatprep.subr.mxu0 0.0
    %1094 = vmatpush1.msra.mxu0 0.0
    %1095 = vmatprep.subr.mxu0 0.0
    %1096 = vmatpush1.msra.mxu0 0.0
    %1097 = vmatprep.subr.mxu0 0.0
    %1098 = vmatpush1.msra.mxu0 0.0
    %1099 = vmatprep.subr.mxu0 0.0
    %1100 = vmatpush1.msra.mxu0 0.0
    %1101 = vmatprep.subr.mxu0 0.0
    %1102 = vmatpush1.msra.mxu0 0.0
    %1103 = vmatprep.subr.mxu0 0.0
    %1104 = vmatpush1.msra.mxu0 0.0
    %1105 = vmatprep.subr.mxu0 0.0
    %1106 = vmatpush1.msra.mxu0 0.0
    %1107 = vmatprep.subr.mxu0 0.0
    %1108 = vmatpush1.msra.mxu0 0.0
    %1109 = vmatprep.subr.mxu0 0.0
    %1110 = vmatpush1.msra.mxu0 0.0
    %1111 = vmatprep.subr.mxu0 0.0
    %1112 = vmatpush1.msra.mxu0 0.0
    %1113 = vmatprep.subr.mxu0 0.0
    %1114 = vmatpush1.msra.mxu0 0.0
    %1115 = vmatprep.subr.mxu0 0.0
    %1116 = vmatpush1.msra.mxu0 %v1070
    %1117 = vmatprep.subr.mxu0 0.0
    %1118 = vmatpush1.msra.mxu0 %v1069
    %1119 = vmatprep.subr.mxu0 0.0
    %1120 = vmatpush2.msra.mxu0 0.0
    %1121 = vmatprep.subr.mxu0 0.0
    %1122 = vmatpush2.msra.mxu0 0.0
    %1123 = vmatprep.subr.mxu0 0.0
    %1124 = vmatpush2.msra.mxu0 0.0
    %1125 = vmatprep.subr.mxu0 0.0
    %1126 = vmatpush2.msra.mxu0 0.0
    %1127 = vmatprep.subr.mxu0 0.0
    %1128 = vmatpush2.msra.mxu0 0.0
    %1129 = vmatprep.subr.mxu0 0.0
    %1130 = vmatpush2.msra.mxu0 0.0
    %1131 = vmatprep.subr.mxu0 0.0
    %1132 = vmatpush2.msra.mxu0 0.0
    %1133 = vmatprep.subr.mxu0 0.0
    %1134 = vmatpush2.msra.mxu0 0.0
    %1135 = vmatprep.subr.mxu0 0.0
    %1136 = vmatpush2.msra.mxu0 0.0
    %1137 = vmatprep.subr.mxu0 0.0
    %1138 = vmatpush2.msra.mxu0 0.0
    %1139 = vmatprep.subr.mxu0 0.0
    %1140 = vmatpush2.msra.mxu0 0.0
    %1141 = vmatprep.subr.mxu0 0.0
    %1142 = vmatpush2.msra.mxu0 0.0
    %1143 = vmatprep.subr.mxu0 0.0
    %1144 = vmatpush2.msra.mxu0 0.0
    %1145 = vmatprep.subr.mxu0 0.0
    %1146 = vmatpush2.msra.mxu0 0.0
    %1147 = vmatprep.subr.mxu0 0.0
    %1148 = vmatpush2.msra.mxu0 0.0
    %1149 = vmatprep.subr.mxu0 0.0
    %1150 = vmatpush2.msra.mxu0 0.0
    %1151 = vmatprep.mubr.f32.mxu0 0.0
    %1152 = vmatmul.mubr.f32.gmra.mxu0 %v1076
    %v1153 = vpop.f32.mrf.mxu0
    %v1154 = vadd.f32 0.0, %v1153
    %v1155 = vpop.f32.mrf.mxu0
    %1156 = vmatprep.mubr.f32.mxu0 0.0
    %1157 = vmatmul.mubr.f32.gmra.mxu0 %v1079
    %v1158 = vpop.f32.mrf.mxu0
    %v1159 = vadd.f32 0.0, %v1158
    %v1160 = vpop.f32.mrf.mxu0
    %1161 = vmatprep.mubr.f32.mxu0 0.0
    %1162 = vmatmul.mubr.f32.gmra.mxu0 %v1082
    %v1163 = vpop.f32.mrf.mxu0
    %v1164 = vadd.f32 0.0, %v1163
    %v1165 = vpop.f32.mrf.mxu0
    %1166 = vmatprep.mubr.f32.mxu0 0.0
    %1167 = vmatmul.mubr.f32.gmra.mxu0 %v1085
    %v1168 = vpop.f32.mrf.mxu0
    %v1169 = vadd.f32 0.0, %v1168
    %v1170 = vpop.f32.mrf.mxu0
    %1171 = vdwg.mxu0
    %v1172 = vld [vmem:[%s2] sm:$0xff]
    %v1173 = vld [vmem:[%s2 + $0x8] sm:$0xff]
    %v1175 = vsel %vm35, %v1154, 0
    %v1178 = vsel %vm35, %v1159, 0
    %v1181 = vsel %vm35, %v1164, 0
    %v1184 = vsel %vm35, %v1169, 0
    %1186 = vmatprep.subr.mxu0 0.0
    %1187 = vmatpush1.msra.mxu0 0.0
    %1188 = vmatprep.subr.mxu0 0.0
    %1189 = vmatpush1.msra.mxu0 0.0
    %1190 = vmatprep.subr.mxu0 0.0
    %1191 = vmatpush1.msra.mxu0 0.0
    %1192 = vmatprep.subr.mxu0 0.0
    %1193 = vmatpush1.msra.mxu0 0.0
    %1194 = vmatprep.subr.mxu0 0.0
    %1195 = vmatpush1.msra.mxu0 0.0
    %1196 = vmatprep.subr.mxu0 0.0
    %1197 = vmatpush1.msra.mxu0 0.0
    %1198 = vmatprep.subr.mxu0 0.0
    %1199 = vmatpush1.msra.mxu0 0.0
    %1200 = vmatprep.subr.mxu0 0.0
    %1201 = vmatpush1.msra.mxu0 0.0
    %1202 = vmatprep.subr.mxu0 0.0
    %1203 = vmatpush1.msra.mxu0 0.0
    %1204 = vmatprep.subr.mxu0 0.0
    %1205 = vmatpush1.msra.mxu0 0.0
    %1206 = vmatprep.subr.mxu0 0.0
    %1207 = vmatpush1.msra.mxu0 0.0
    %1208 = vmatprep.subr.mxu0 0.0
    %1209 = vmatpush1.msra.mxu0 0.0
    %1210 = vmatprep.subr.mxu0 0.0
    %1211 = vmatpush1.msra.mxu0 0.0
    %1212 = vmatprep.subr.mxu0 0.0
    %1213 = vmatpush1.msra.mxu0 0.0
    %1214 = vmatprep.subr.mxu0 0.0
    %1215 = vmatpush1.msra.mxu0 %v1173
    %1216 = vmatprep.subr.mxu0 0.0
    %1217 = vmatpush1.msra.mxu0 %v1172
    %1218 = vmatprep.subr.mxu0 0.0
    %1219 = vmatpush2.msra.mxu0 0.0
    %1220 = vmatprep.subr.mxu0 0.0
    %1221 = vmatpush2.msra.mxu0 0.0
    %1222 = vmatprep.subr.mxu0 0.0
    %1223 = vmatpush2.msra.mxu0 0.0
    %1224 = vmatprep.subr.mxu0 0.0
    %1225 = vmatpush2.msra.mxu0 0.0
    %1226 = vmatprep.subr.mxu0 0.0
    %1227 = vmatpush2.msra.mxu0 0.0
    %1228 = vmatprep.subr.mxu0 0.0
    %1229 = vmatpush2.msra.mxu0 0.0
    %1230 = vmatprep.subr.mxu0 0.0
    %1231 = vmatpush2.msra.mxu0 0.0
    %1232 = vmatprep.subr.mxu0 0.0
    %1233 = vmatpush2.msra.mxu0 0.0
    %1234 = vmatprep.subr.mxu0 0.0
    %1235 = vmatpush2.msra.mxu0 0.0
    %1236 = vmatprep.subr.mxu0 0.0
    %1237 = vmatpush2.msra.mxu0 0.0
    %1238 = vmatprep.subr.mxu0 0.0
    %1239 = vmatpush2.msra.mxu0 0.0
    %1240 = vmatprep.subr.mxu0 0.0
    %1241 = vmatpush2.msra.mxu0 0.0
    %1242 = vmatprep.subr.mxu0 0.0
    %1243 = vmatpush2.msra.mxu0 0.0
    %1244 = vmatprep.subr.mxu0 0.0
    %1245 = vmatpush2.msra.mxu0 0.0
    %1246 = vmatprep.subr.mxu0 0.0
    %1247 = vmatpush2.msra.mxu0 0.0
    %1248 = vmatprep.subr.mxu0 0.0
    %1249 = vmatpush2.msra.mxu0 0.0
    %1250 = vmatprep.mubr.f32.mxu0 0.0
    %1251 = vmatmul.mubr.f32.gmra.mxu0 %v1175
    %v1252 = vpop.f32.mrf.mxu0
    %v1253 = vadd.f32 0.0, %v1252
    %v1254 = vpop.f32.mrf.mxu0
    %1255 = vmatprep.mubr.f32.mxu0 0.0
    %1256 = vmatmul.mubr.f32.gmra.mxu0 %v1178
    %v1257 = vpop.f32.mrf.mxu0
    %v1258 = vadd.f32 0.0, %v1257
    %v1259 = vpop.f32.mrf.mxu0
    %1260 = vmatprep.mubr.f32.mxu0 0.0
    %1261 = vmatmul.mubr.f32.gmra.mxu0 %v1181
    %v1262 = vpop.f32.mrf.mxu0
    %v1263 = vadd.f32 0.0, %v1262
    %v1264 = vpop.f32.mrf.mxu0
    %1265 = vmatprep.mubr.f32.mxu0 0.0
    %1266 = vmatmul.mubr.f32.gmra.mxu0 %v1184
    %v1267 = vpop.f32.mrf.mxu0
    %v1268 = vadd.f32 0.0, %v1267
    %v1269 = vpop.f32.mrf.mxu0
    %1270 = vdwg.mxu0
    %s1271 = scalar_lea.vmem [#allocation5], 160
    %1272 = vst [vmem:[%s1271] sm:$0xff] %v1253
    %1273 = vst [vmem:[%s1271 + $0x8] sm:$0xff] %v1258
    %1274 = vst [vmem:[%s1271 + $0x10] sm:$0xff] %v1263
    %1275 = vst [vmem:[%s1271 + $0x18] sm:$0xff] %v1268
    %s1276 = scalar_lea.vmem [#allocation2], 96
    %v1277 = vld [vmem:[%s1276] sm:$0xff]
    %v1278 = vld [vmem:[%s1276 + $0x8] sm:$0xff]
    %v1279 = vld [vmem:[%s1] sm:$0xff]
    %v1280 = vld [vmem:[%s1 + $0x8] sm:$0xff]
    %v1281 = vld [vmem:[%s1 + $0x10] sm:$0xff]
    %v1282 = vld [vmem:[%s1 + $0x18] sm:$0xff]
    %v1284 = vsel %vm35, %v1279, 0
    %v1287 = vsel %vm35, %v1280, 0
    %v1290 = vsel %vm35, %v1281, 0
    %v1293 = vsel %vm35, %v1282, 0
    %1295 = vmatprep.subr.mxu0 0.0
    %1296 = vmatpush1.msra.mxu0 0.0
    %1297 = vmatprep.subr.mxu0 0.0
    %1298 = vmatpush1.msra.mxu0 0.0
    %1299 = vmatprep.subr.mxu0 0.0
    %1300 = vmatpush1.msra.mxu0 0.0
    %1301 = vmatprep.subr.mxu0 0.0
    %1302 = vmatpush1.msra.mxu0 0.0
    %1303 = vmatprep.subr.mxu0 0.0
    %1304 = vmatpush1.msra.mxu0 0.0
    %1305 = vmatprep.subr.mxu0 0.0
    %1306 = vmatpush1.msra.mxu0 0.0
    %1307 = vmatprep.subr.mxu0 0.0
    %1308 = vmatpush1.msra.mxu0 0.0
    %1309 = vmatprep.subr.mxu0 0.0
    %1310 = vmatpush1.msra.mxu0 0.0
    %1311 = vmatprep.subr.mxu0 0.0
    %1312 = vmatpush1.msra.mxu0 0.0
    %1313 = vmatprep.subr.mxu0 0.0
    %1314 = vmatpush1.msra.mxu0 0.0
    %1315 = vmatprep.subr.mxu0 0.0
    %1316 = vmatpush1.msra.mxu0 0.0
    %1317 = vmatprep.subr.mxu0 0.0
    %1318 = vmatpush1.msra.mxu0 0.0
    %1319 = vmatprep.subr.mxu0 0.0
    %1320 = vmatpush1.msra.mxu0 0.0
    %1321 = vmatprep.subr.mxu0 0.0
    %1322 = vmatpush1.msra.mxu0 0.0
    %1323 = vmatprep.subr.mxu0 0.0
    %1324 = vmatpush1.msra.mxu0 %v1278
    %1325 = vmatprep.subr.mxu0 0.0
    %1326 = vmatpush1.msra.mxu0 %v1277
    %1327 = vmatprep.subr.mxu0 0.0
    %1328 = vmatpush2.msra.mxu0 0.0
    %1329 = vmatprep.subr.mxu0 0.0
    %1330 = vmatpush2.msra.mxu0 0.0
    %1331 = vmatprep.subr.mxu0 0.0
    %1332 = vmatpush2.msra.mxu0 0.0
    %1333 = vmatprep.subr.mxu0 0.0
    %1334 = vmatpush2.msra.mxu0 0.0
    %1335 = vmatprep.subr.mxu0 0.0
    %1336 = vmatpush2.msra.mxu0 0.0
    %1337 = vmatprep.subr.mxu0 0.0
    %1338 = vmatpush2.msra.mxu0 0.0
    %1339 = vmatprep.subr.mxu0 0.0
    %1340 = vmatpush2.msra.mxu0 0.0
    %1341 = vmatprep.subr.mxu0 0.0
    %1342 = vmatpush2.msra.mxu0 0.0
    %1343 = vmatprep.subr.mxu0 0.0
    %1344 = vmatpush2.msra.mxu0 0.0
    %1345 = vmatprep.subr.mxu0 0.0
    %1346 = vmatpush2.msra.mxu0 0.0
    %1347 = vmatprep.subr.mxu0 0.0
    %1348 = vmatpush2.msra.mxu0 0.0
    %1349 = vmatprep.subr.mxu0 0.0
    %1350 = vmatpush2.msra.mxu0 0.0
    %1351 = vmatprep.subr.mxu0 0.0
    %1352 = vmatpush2.msra.mxu0 0.0
    %1353 = vmatprep.subr.mxu0 0.0
    %1354 = vmatpush2.msra.mxu0 0.0
    %1355 = vmatprep.subr.mxu0 0.0
    %1356 = vmatpush2.msra.mxu0 0.0
    %1357 = vmatprep.subr.mxu0 0.0
    %1358 = vmatpush2.msra.mxu0 0.0
    %1359 = vmatprep.mubr.f32.mxu0 0.0
    %1360 = vmatmul.mubr.f32.gmra.mxu0 %v1284
    %v1361 = vpop.f32.mrf.mxu0
    %v1362 = vadd.f32 0.0, %v1361
    %v1363 = vpop.f32.mrf.mxu0
    %1364 = vmatprep.mubr.f32.mxu0 0.0
    %1365 = vmatmul.mubr.f32.gmra.mxu0 %v1287
    %v1366 = vpop.f32.mrf.mxu0
    %v1367 = vadd.f32 0.0, %v1366
    %v1368 = vpop.f32.mrf.mxu0
    %1369 = vmatprep.mubr.f32.mxu0 0.0
    %1370 = vmatmul.mubr.f32.gmra.mxu0 %v1290
    %v1371 = vpop.f32.mrf.mxu0
    %v1372 = vadd.f32 0.0, %v1371
    %v1373 = vpop.f32.mrf.mxu0
    %1374 = vmatprep.mubr.f32.mxu0 0.0
    %1375 = vmatmul.mubr.f32.gmra.mxu0 %v1293
    %v1376 = vpop.f32.mrf.mxu0
    %v1377 = vadd.f32 0.0, %v1376
    %v1378 = vpop.f32.mrf.mxu0
    %1379 = vdwg.mxu0
    %v1380 = vld [vmem:[%s2] sm:$0xff]
    %v1381 = vld [vmem:[%s2 + $0x8] sm:$0xff]
    %v1383 = vsel %vm35, %v1362, 0
    %v1386 = vsel %vm35, %v1367, 0
    %v1389 = vsel %vm35, %v1372, 0
    %v1392 = vsel %vm35, %v1377, 0
    %1394 = vmatprep.subr.mxu0 0.0
    %1395 = vmatpush1.msra.mxu0 0.0
    %1396 = vmatprep.subr.mxu0 0.0
    %1397 = vmatpush1.msra.mxu0 0.0
    %1398 = vmatprep.subr.mxu0 0.0
    %1399 = vmatpush1.msra.mxu0 0.0
    %1400 = vmatprep.subr.mxu0 0.0
    %1401 = vmatpush1.msra.mxu0 0.0
    %1402 = vmatprep.subr.mxu0 0.0
    %1403 = vmatpush1.msra.mxu0 0.0
    %1404 = vmatprep.subr.mxu0 0.0
    %1405 = vmatpush1.msra.mxu0 0.0
    %1406 = vmatprep.subr.mxu0 0.0
    %1407 = vmatpush1.msra.mxu0 0.0
    %1408 = vmatprep.subr.mxu0 0.0
    %1409 = vmatpush1.msra.mxu0 0.0
    %1410 = vmatprep.subr.mxu0 0.0
    %1411 = vmatpush1.msra.mxu0 0.0
    %1412 = vmatprep.subr.mxu0 0.0
    %1413 = vmatpush1.msra.mxu0 0.0
    %1414 = vmatprep.subr.mxu0 0.0
    %1415 = vmatpush1.msra.mxu0 0.0
    %1416 = vmatprep.subr.mxu0 0.0
    %1417 = vmatpush1.msra.mxu0 0.0
    %1418 = vmatprep.subr.mxu0 0.0
    %1419 = vmatpush1.msra.mxu0 0.0
    %1420 = vmatprep.subr.mxu0 0.0
    %1421 = vmatpush1.msra.mxu0 0.0
    %1422 = vmatprep.subr.mxu0 0.0
    %1423 = vmatpush1.msra.mxu0 %v1381
    %1424 = vmatprep.subr.mxu0 0.0
    %1425 = vmatpush1.msra.mxu0 %v1380
    %1426 = vmatprep.subr.mxu0 0.0
    %1427 = vmatpush2.msra.mxu0 0.0
    %1428 = vmatprep.subr.mxu0 0.0
    %1429 = vmatpush2.msra.mxu0 0.0
    %1430 = vmatprep.subr.mxu0 0.0
    %1431 = vmatpush2.msra.mxu0 0.0
    %1432 = vmatprep.subr.mxu0 0.0
    %1433 = vmatpush2.msra.mxu0 0.0
    %1434 = vmatprep.subr.mxu0 0.0
    %1435 = vmatpush2.msra.mxu0 0.0
    %1436 = vmatprep.subr.mxu0 0.0
    %1437 = vmatpush2.msra.mxu0 0.0
    %1438 = vmatprep.subr.mxu0 0.0
    %1439 = vmatpush2.msra.mxu0 0.0
    %1440 = vmatprep.subr.mxu0 0.0
    %1441 = vmatpush2.msra.mxu0 0.0
    %1442 = vmatprep.subr.mxu0 0.0
    %1443 = vmatpush2.msra.mxu0 0.0
    %1444 = vmatprep.subr.mxu0 0.0
    %1445 = vmatpush2.msra.mxu0 0.0
    %1446 = vmatprep.subr.mxu0 0.0
    %1447 = vmatpush2.msra.mxu0 0.0
    %1448 = vmatprep.subr.mxu0 0.0
    %1449 = vmatpush2.msra.mxu0 0.0
    %1450 = vmatprep.subr.mxu0 0.0
    %1451 = vmatpush2.msra.mxu0 0.0
    %1452 = vmatprep.subr.mxu0 0.0
    %1453 = vmatpush2.msra.mxu0 0.0
    %1454 = vmatprep.subr.mxu0 0.0
    %1455 = vmatpush2.msra.mxu0 0.0
    %1456 = vmatprep.subr.mxu0 0.0
    %1457 = vmatpush2.msra.mxu0 0.0
    %1458 = vmatprep.mubr.f32.mxu0 0.0
    %1459 = vmatmul.mubr.f32.gmra.mxu0 %v1383
    %v1460 = vpop.f32.mrf.mxu0
    %v1461 = vadd.f32 0.0, %v1460
    %v1462 = vpop.f32.mrf.mxu0
    %1463 = vmatprep.mubr.f32.mxu0 0.0
    %1464 = vmatmul.mubr.f32.gmra.mxu0 %v1386
    %v1465 = vpop.f32.mrf.mxu0
    %v1466 = vadd.f32 0.0, %v1465
    %v1467 = vpop.f32.mrf.mxu0
    %1468 = vmatprep.mubr.f32.mxu0 0.0
    %1469 = vmatmul.mubr.f32.gmra.mxu0 %v1389
    %v1470 = vpop.f32.mrf.mxu0
    %v1471 = vadd.f32 0.0, %v1470
    %v1472 = vpop.f32.mrf.mxu0
    %1473 = vmatprep.mubr.f32.mxu0 0.0
    %1474 = vmatmul.mubr.f32.gmra.mxu0 %v1392
    %v1475 = vpop.f32.mrf.mxu0
    %v1476 = vadd.f32 0.0, %v1475
    %v1477 = vpop.f32.mrf.mxu0
    %1478 = vdwg.mxu0
    %s1479 = scalar_lea.vmem [#allocation5], 192
    %1480 = vst [vmem:[%s1479] sm:$0xff] %v1461
    %1481 = vst [vmem:[%s1479 + $0x8] sm:$0xff] %v1466
    %1482 = vst [vmem:[%s1479 + $0x10] sm:$0xff] %v1471
    %1483 = vst [vmem:[%s1479 + $0x18] sm:$0xff] %v1476
    %s1484 = scalar_lea.vmem [#allocation2], 112
    %v1485 = vld [vmem:[%s1484] sm:$0xff]
    %v1486 = vld [vmem:[%s1484 + $0x8] sm:$0xff]
    %v1487 = vld [vmem:[%s1] sm:$0xff]
    %v1488 = vld [vmem:[%s1 + $0x8] sm:$0xff]
    %v1489 = vld [vmem:[%s1 + $0x10] sm:$0xff]
    %v1490 = vld [vmem:[%s1 + $0x18] sm:$0xff]
    %v1492 = vsel %vm35, %v1487, 0
    %v1495 = vsel %vm35, %v1488, 0
    %v1498 = vsel %vm35, %v1489, 0
    %v1501 = vsel %vm35, %v1490, 0
    %1503 = vmatprep.subr.mxu0 0.0
    %1504 = vmatpush1.msra.mxu0 0.0
    %1505 = vmatprep.subr.mxu0 0.0
    %1506 = vmatpush1.msra.mxu0 0.0
    %1507 = vmatprep.subr.mxu0 0.0
    %1508 = vmatpush1.msra.mxu0 0.0
    %1509 = vmatprep.subr.mxu0 0.0
    %1510 = vmatpush1.msra.mxu0 0.0
    %1511 = vmatprep.subr.mxu0 0.0
    %1512 = vmatpush1.msra.mxu0 0.0
    %1513 = vmatprep.subr.mxu0 0.0
    %1514 = vmatpush1.msra.mxu0 0.0
    %1515 = vmatprep.subr.mxu0 0.0
    %1516 = vmatpush1.msra.mxu0 0.0
    %1517 = vmatprep.subr.mxu0 0.0
    %1518 = vmatpush1.msra.mxu0 0.0
    %1519 = vmatprep.subr.mxu0 0.0
    %1520 = vmatpush1.msra.mxu0 0.0
    %1521 = vmatprep.subr.mxu0 0.0
    %1522 = vmatpush1.msra.mxu0 0.0
    %1523 = vmatprep.subr.mxu0 0.0
    %1524 = vmatpush1.msra.mxu0 0.0
    %1525 = vmatprep.subr.mxu0 0.0
    %1526 = vmatpush1.msra.mxu0 0.0
    %1527 = vmatprep.subr.mxu0 0.0
    %1528 = vmatpush1.msra.mxu0 0.0
    %1529 = vmatprep.subr.mxu0 0.0
    %1530 = vmatpush1.msra.mxu0 0.0
    %1531 = vmatprep.subr.mxu0 0.0
    %1532 = vmatpush1.msra.mxu0 %v1486
    %1533 = vmatprep.subr.mxu0 0.0
    %1534 = vmatpush1.msra.mxu0 %v1485
    %1535 = vmatprep.subr.mxu0 0.0
    %1536 = vmatpush2.msra.mxu0 0.0
    %1537 = vmatprep.subr.mxu0 0.0
    %1538 = vmatpush2.msra.mxu0 0.0
    %1539 = vmatprep.subr.mxu0 0.0
    %1540 = vmatpush2.msra.mxu0 0.0
    %1541 = vmatprep.subr.mxu0 0.0
    %1542 = vmatpush2.msra.mxu0 0.0
    %1543 = vmatprep.subr.mxu0 0.0
    %1544 = vmatpush2.msra.mxu0 0.0
    %1545 = vmatprep.subr.mxu0 0.0
    %1546 = vmatpush2.msra.mxu0 0.0
    %1547 = vmatprep.subr.mxu0 0.0
    %1548 = vmatpush2.msra.mxu0 0.0
    %1549 = vmatprep.subr.mxu0 0.0
    %1550 = vmatpush2.msra.mxu0 0.0
    %1551 = vmatprep.subr.mxu0 0.0
    %1552 = vmatpush2.msra.mxu0 0.0
    %1553 = vmatprep.subr.mxu0 0.0
    %1554 = vmatpush2.msra.mxu0 0.0
    %1555 = vmatprep.subr.mxu0 0.0
    %1556 = vmatpush2.msra.mxu0 0.0
    %1557 = vmatprep.subr.mxu0 0.0
    %1558 = vmatpush2.msra.mxu0 0.0
    %1559 = vmatprep.subr.mxu0 0.0
    %1560 = vmatpush2.msra.mxu0 0.0
    %1561 = vmatprep.subr.mxu0 0.0
    %1562 = vmatpush2.msra.mxu0 0.0
    %1563 = vmatprep.subr.mxu0 0.0
    %1564 = vmatpush2.msra.mxu0 0.0
    %1565 = vmatprep.subr.mxu0 0.0
    %1566 = vmatpush2.msra.mxu0 0.0
    %1567 = vmatprep.mubr.f32.mxu0 0.0
    %1568 = vmatmul.mubr.f32.gmra.mxu0 %v1492
    %v1569 = vpop.f32.mrf.mxu0
    %v1570 = vadd.f32 0.0, %v1569
    %v1571 = vpop.f32.mrf.mxu0
    %1572 = vmatprep.mubr.f32.mxu0 0.0
    %1573 = vmatmul.mubr.f32.gmra.mxu0 %v1495
    %v1574 = vpop.f32.mrf.mxu0
    %v1575 = vadd.f32 0.0, %v1574
    %v1576 = vpop.f32.mrf.mxu0
    %1577 = vmatprep.mubr.f32.mxu0 0.0
    %1578 = vmatmul.mubr.f32.gmra.mxu0 %v1498
    %v1579 = vpop.f32.mrf.mxu0
    %v1580 = vadd.f32 0.0, %v1579
    %v1581 = vpop.f32.mrf.mxu0
    %1582 = vmatprep.mubr.f32.mxu0 0.0
    %1583 = vmatmul.mubr.f32.gmra.mxu0 %v1501
    %v1584 = vpop.f32.mrf.mxu0
    %v1585 = vadd.f32 0.0, %v1584
    %v1586 = vpop.f32.mrf.mxu0
    %1587 = vdwg.mxu0
    %v1588 = vld [vmem:[%s2] sm:$0xff]
    %v1589 = vld [vmem:[%s2 + $0x8] sm:$0xff]
    %v1591 = vsel %vm35, %v1570, 0
    %v1594 = vsel %vm35, %v1575, 0
    %v1597 = vsel %vm35, %v1580, 0
    %v1600 = vsel %vm35, %v1585, 0
    %1602 = vmatprep.subr.mxu0 0.0
    %1603 = vmatpush1.msra.mxu0 0.0
    %1604 = vmatprep.subr.mxu0 0.0
    %1605 = vmatpush1.msra.mxu0 0.0
    %1606 = vmatprep.subr.mxu0 0.0
    %1607 = vmatpush1.msra.mxu0 0.0
    %1608 = vmatprep.subr.mxu0 0.0
    %1609 = vmatpush1.msra.mxu0 0.0
    %1610 = vmatprep.subr.mxu0 0.0
    %1611 = vmatpush1.msra.mxu0 0.0
    %1612 = vmatprep.subr.mxu0 0.0
    %1613 = vmatpush1.msra.mxu0 0.0
    %1614 = vmatprep.subr.mxu0 0.0
    %1615 = vmatpush1.msra.mxu0 0.0
    %1616 = vmatprep.subr.mxu0 0.0
    %1617 = vmatpush1.msra.mxu0 0.0
    %1618 = vmatprep.subr.mxu0 0.0
    %1619 = vmatpush1.msra.mxu0 0.0
    %1620 = vmatprep.subr.mxu0 0.0
    %1621 = vmatpush1.msra.mxu0 0.0
    %1622 = vmatprep.subr.mxu0 0.0
    %1623 = vmatpush1.msra.mxu0 0.0
    %1624 = vmatprep.subr.mxu0 0.0
    %1625 = vmatpush1.msra.mxu0 0.0
    %1626 = vmatprep.subr.mxu0 0.0
    %1627 = vmatpush1.msra.mxu0 0.0
    %1628 = vmatprep.subr.mxu0 0.0
    %1629 = vmatpush1.msra.mxu0 0.0
    %1630 = vmatprep.subr.mxu0 0.0
    %1631 = vmatpush1.msra.mxu0 %v1589
    %1632 = vmatprep.subr.mxu0 0.0
    %1633 = vmatpush1.msra.mxu0 %v1588
    %1634 = vmatprep.subr.mxu0 0.0
    %1635 = vmatpush2.msra.mxu0 0.0
    %1636 = vmatprep.subr.mxu0 0.0
    %1637 = vmatpush2.msra.mxu0 0.0
    %1638 = vmatprep.subr.mxu0 0.0
    %1639 = vmatpush2.msra.mxu0 0.0
    %1640 = vmatprep.subr.mxu0 0.0
    %1641 = vmatpush2.msra.mxu0 0.0
    %1642 = vmatprep.subr.mxu0 0.0
    %1643 = vmatpush2.msra.mxu0 0.0
    %1644 = vmatprep.subr.mxu0 0.0
    %1645 = vmatpush2.msra.mxu0 0.0
    %1646 = vmatprep.subr.mxu0 0.0
    %1647 = vmatpush2.msra.mxu0 0.0
    %1648 = vmatprep.subr.mxu0 0.0
    %1649 = vmatpush2.msra.mxu0 0.0
    %1650 = vmatprep.subr.mxu0 0.0
    %1651 = vmatpush2.msra.mxu0 0.0
    %1652 = vmatprep.subr.mxu0 0.0
    %1653 = vmatpush2.msra.mxu0 0.0
    %1654 = vmatprep.subr.mxu0 0.0
    %1655 = vmatpush2.msra.mxu0 0.0
    %1656 = vmatprep.subr.mxu0 0.0
    %1657 = vmatpush2.msra.mxu0 0.0
    %1658 = vmatprep.subr.mxu0 0.0
    %1659 = vmatpush2.msra.mxu0 0.0
    %1660 = vmatprep.subr.mxu0 0.0
    %1661 = vmatpush2.msra.mxu0 0.0
    %1662 = vmatprep.subr.mxu0 0.0
    %1663 = vmatpush2.msra.mxu0 0.0
    %1664 = vmatprep.subr.mxu0 0.0
    %1665 = vmatpush2.msra.mxu0 0.0
    %1666 = vmatprep.mubr.f32.mxu0 0.0
    %1667 = vmatmul.mubr.f32.gmra.mxu0 %v1591
    %v1668 = vpop.f32.mrf.mxu0
    %v1669 = vadd.f32 0.0, %v1668
    %v1670 = vpop.f32.mrf.mxu0
    %1671 = vmatprep.mubr.f32.mxu0 0.0
    %1672 = vmatmul.mubr.f32.gmra.mxu0 %v1594
    %v1673 = vpop.f32.mrf.mxu0
    %v1674 = vadd.f32 0.0, %v1673
    %v1675 = vpop.f32.mrf.mxu0
    %1676 = vmatprep.mubr.f32.mxu0 0.0
    %1677 = vmatmul.mubr.f32.gmra.mxu0 %v1597
    %v1678 = vpop.f32.mrf.mxu0
    %v1679 = vadd.f32 0.0, %v1678
    %v1680 = vpop.f32.mrf.mxu0
    %1681 = vmatprep.mubr.f32.mxu0 0.0
    %1682 = vmatmul.mubr.f32.gmra.mxu0 %v1600
    %v1683 = vpop.f32.mrf.mxu0
    %v1684 = vadd.f32 0.0, %v1683
    %v1685 = vpop.f32.mrf.mxu0
    %1686 = vdwg.mxu0
    %s1687 = scalar_lea.vmem [#allocation5], 224
    %1688 = vst [vmem:[%s1687] sm:$0xff] %v1669
    %1689 = vst [vmem:[%s1687 + $0x8] sm:$0xff] %v1674
    %1690 = vst [vmem:[%s1687 + $0x10] sm:$0xff] %v1679
    %1691 = vst [vmem:[%s1687 + $0x18] sm:$0xff] %v1684
    // Predicated region
    $region18: #{tpu_custom_call.1} parent=1 // pred_check
      _
    $region19: #{tpu_custom_call.1} parent=1 // pred_check_branch
      %1693 = sbr.rel (0) target = $region21
    $region20: #{tpu_custom_call.1} parent=1 // pred_region
      %s1695 = ssub.s32 4096, 4096
      %1696 = vsyncadd [#allocation4], %s1695
      %s1697 = sshll.u32 [#allocation5], 4
      %s1698 = int_to_ptr.vmem [resolvable:$true] %s1697
      %1703 = dma.vmem_to_hbm [thread:$0]  %s1698, 4096, %s3, [#allocation4], 128, 128, 8
    $region21: #{tpu_custom_call.1} parent=1 // pred_fallthru
      _
    // Predicated region
    $region22: #{tpu_custom_call.1} parent=1 // pred_check
      _
    $region23: #{tpu_custom_call.1} parent=1 // pred_check_branch
      %1705 = sbr.rel (0) target = $region25
    $region24: #{tpu_custom_call.1} parent=1 // pred_region
      %1706 = dma.done [#allocation4], 4096
    $region25: #{tpu_custom_call.1} parent=1 // pred_fallthru
      _
    %1707 = vsyncpa [#allocation3], 1
    %1708 = vsyncpa [#allocation4], 1

</llo_original>
